<compile_context>
chip_gen: v5e
topology: v5e:2x2
jax: 0.10.0
libtpu: 0.0.40
codegen_flags: <defaults>
</compile_context>

<pallas_src>
import functools

import jax
import jax.numpy as jnp
from jax import lax
from jax.experimental import pallas as pl
from jax.experimental.pallas import tpu as pltpu

N_SQUARES = 64
N_PIECE_CLASSES = 13
N_TURN = 1
N_CASTLING = 4
N_EN_PASSANT = 65
N_TIMERS = 2
PIECES_LEN = N_SQUARES * N_PIECE_CLASSES                        # 832
BINARY_RANGE = PIECES_LEN + N_TURN + N_CASTLING + N_EN_PASSANT  # 902
D = BINARY_RANGE + N_TIMERS                                     # 904
REST = N_TURN + N_CASTLING + N_EN_PASSANT + N_TIMERS            # 72
LANES = 128                                                     # vreg lane width

# lane layout inside the zero-padded 128-lane "rest" slab (cols 832:904 of the board)
TURN_HI = 1
CAST_LO, CAST_HI = 1, 5
EP_LO, EP_HI = 5, 70
CLK_LO, CLK_HI = 70, 72

NEG = -1e30


def _softplus(x):
    # numerically stable log(1 + exp(x))
    return jnp.maximum(x, 0.0) + jnp.log(1.0 + jnp.exp(-jnp.abs(x)))


def board_loss_kernel(b_actual, pz_ref, lab_ref, rz_ref, rt_ref, pw_ref, rw_ref, part_ref):
    """One batch tile -> one (8, 128) block of partial sums.

    rows: 0 pieces num | 1 pieces den | 2 turn BCE sum | 3 castling BCE sum |
          4 en-passant num | 5 en-passant den | 6 clock L1 sum | 7 unused
    Pieces rows are per-(pair-parity, square) partials (halves combined in the
    finalize); scalar rows are broadcast across the 128 lanes.
    """
    f32 = jnp.float32
    tbp = pz_ref.shape[1]              # packed piece rows per tile (= tile // 2)
    tile = rz_ref.shape[0]             # batch rows per tile
    base = pl.program_id(0) * tile     # first global batch row of this tile

    # ---------------- pieces: 64 per-square weighted CrossEntropy --------------
    # pz_ref: (13, tbp, 128) class-major, two batch rows packed per 128 lanes
    # (lane // 64 = row of the pair, lane % 64 = square) -> class reductions are
    # dense per-lane accumulations over 13 full-width slabs.
    lane = lax.broadcasted_iota(jnp.int32, (tbp, LANES), 1)
    prow = lax.broadcasted_iota(jnp.int32, (tbp, LANES), 0)
    gidx = base + 2 * prow + (lane >= N_SQUARES).astype(jnp.int32)
    validf = (gidx < b_actual).astype(f32)          # mask for padded batch rows

    # pass 1: per-(row, square) max over the 13 classes (native dtype; max is exact)
    xmax = pz_ref[0]
    for c in range(1, N_PIECE_CLASSES):
        xmax = jnp.maximum(xmax, pz_ref[c])
    xmax = xmax.astype(f32)

    # pass 2: log-sum-exp + label-indexed selection of logit and CE weight
    lab = lab_ref[...]                               # (tbp, 128) int32 class labels
    sumexp = jnp.zeros((tbp, LANES), f32)
    xsel = jnp.zeros((tbp, LANES), f32)
    wsel = jnp.zeros((tbp, LANES), f32)
    for c in range(N_PIECE_CLASSES):
        xc = pz_ref[c].astype(f32)
        sumexp = sumexp + jnp.exp(xc - xmax)
        sel = (lab == c).astype(f32)                 # one compare per class
        xsel = xsel + sel * xc
        wsel = wsel + sel * pw_ref[c].astype(f32)    # (1, 128) weight row broadcast
    lse = jnp.log(sumexp) + xmax
    wsel = wsel * validf
    num = jnp.sum(wsel * (lse - xsel), axis=0, keepdims=True)    # (1, 128)
    den = jnp.sum(wsel, axis=0, keepdims=True)                   # (1, 128)

    # ---------------- rest slab: turn / castling / en-passant / timers ---------
    rz = rz_ref[...].astype(f32)                     # (tile, 128), lanes 72..127 pad
    rt = rt_ref[...].astype(f32)
    rw = rw_ref[...].astype(f32)                     # (1, 128)

    rlane = lax.broadcasted_iota(jnp.int32, (tile, LANES), 1)
    rrow = lax.broadcasted_iota(jnp.int32, (tile, LANES), 0)
    rvalid = ((base + rrow) < b_actual).astype(f32)

    is_turn = rlane < TURN_HI
    is_cast = (rlane >= CAST_LO) & (rlane < CAST_HI)
    is_ep = (rlane >= EP_LO) & (rlane < EP_HI)
    is_clk = (rlane >= CLK_LO) & (rlane < CLK_HI)

    # BCEWithLogits(pos_weight) terms; only turn / castling lanes are kept
    bce = (rw * rt * _softplus(-rz) + (1.0 - rt) * _softplus(rz)) * rvalid
    turn_sum = jnp.sum(jnp.where(is_turn, bce, 0.0))
    cast_sum = jnp.sum(jnp.where(is_cast, bce, 0.0))

    # timers: L1 partial sum
    clock_sum = jnp.sum(jnp.where(is_clk, jnp.abs(rz - rt) * rvalid, 0.0))

    # en passant: weighted CrossEntropy over lanes [5, 70)
    ex = jnp.where(is_ep, rz, NEG)
    et = jnp.where(is_ep, rt, NEG)
    ew = jnp.where(is_ep, rw, 0.0) * rvalid
    ecls = rlane.astype(f32)
    etmax = jnp.max(et, axis=1, keepdims=True)
    eidx = jnp.min(jnp.where(et >= etmax, ecls, f32(1e9)), axis=1, keepdims=True)
    eoh = (ecls == eidx).astype(f32)                 # first-occurrence argmax one-hot
    exmax = jnp.max(ex, axis=1, keepdims=True)
    e_lse = jnp.log(jnp.sum(jnp.exp(ex - exmax), axis=1, keepdims=True)) + exmax
    e_xsel = jnp.sum(eoh * ex, axis=1, keepdims=True)
    e_wsel = jnp.sum(eoh * ew, axis=1, keepdims=True)
    ep_num = jnp.sum(e_wsel * (e_lse - e_xsel))
    ep_den = jnp.sum(e_wsel)

    # ---------------- emit this tile's partial-sum block (one dense store) -----
    zero = jnp.zeros((1, LANES), f32)
    part_ref[...] = jnp.concatenate(
        [num, den, zero + turn_sum, zero + cast_sum,
         zero + ep_num, zero + ep_den, zero + clock_sum, zero], axis=0)


def _round_up(x, m):
    return ((x + m - 1) // m) * m


def _choose_tile(b, max_tile):
    """Batch rows per grid step: multiple of 16 (8 packed sublanes x 2-row lane pack)."""
    max_tile = max(16, (max_tile // 16) * 16)
    tile = min(max_tile, _round_up(b, 16))
    nt = _round_up(b, tile) // tile
    if nt == 1 and tile > 16:
        # split so the "parallel" batch axis can feed both TensorCores on v7x
        tile = max(16, _round_up(_round_up(b, 2) // 2, 16))
        nt = _round_up(b, tile) // tile
    return tile, nt


@functools.partial(jax.jit, static_argnames=("max_batch_tile",))
def board_loss(output, target, piece_w, turn_pw, cast_pw, ep_w, *, max_batch_tile=512):
    b = output.shape[0]
    assert output.shape == (b, D) and target.shape == (b, D)
    tile, nt = _choose_tile(b, max_batch_tile)
    b_pad = nt * tile
    tbp = tile // 2

    # pieces logits: class-major + batch-pair lane packing -> (13, b_pad//2, 128).
    # Kept in the model dtype (bf16 OK); with allow_input_fusion XLA may fuse this
    # reshape/transpose/pad into the pallas_call operand fetch.
    pz = output[:, :PIECES_LEN].reshape(b, N_SQUARES, N_PIECE_CLASSES).transpose(2, 0, 1)
    if b_pad != b:
        pz = jnp.pad(pz, ((0, 0), (0, b_pad - b), (0, 0)))
    pz = pz.reshape(N_PIECE_CLASSES, b_pad // 2, 2 * N_SQUARES)

    # piece targets as int32 class labels (replaces the one-hot pt HBM stream)
    lab = jnp.argmax(
        target[:, :PIECES_LEN].reshape(b, N_SQUARES, N_PIECE_CLASSES), axis=-1
    ).astype(jnp.int32)
    if b_pad != b:
        lab = jnp.pad(lab, ((0, b_pad - b), (0, 0)))
    lab = lab.reshape(b_pad // 2, 2 * N_SQUARES)

    # rest slab (turn|castling|ep|timers) padded to a full 128-lane width
    def rest(x):
        return jnp.pad(x[:, PIECES_LEN:], ((0, b_pad - b), (0, LANES - REST)))

    rz = rest(output)
    rt = rest(target)

    # weights: piece CE weights duplicated into both 64-lane halves; rest weights
    # = [turn_pw | cast_pw | ep_w | zeros(timers + pad)]
    pwT = piece_w.astype(jnp.float32).T                                   # (13, 64)
    pw = jnp.concatenate([pwT, pwT], axis=-1).reshape(N_PIECE_CLASSES, 1, LANES)
    rw = jnp.concatenate([
        turn_pw.reshape(-1), cast_pw.reshape(-1), ep_w.reshape(-1),
        jnp.zeros((LANES - (N_TURN + N_CASTLING + N_EN_PASSANT),), jnp.float32),
    ]).astype(jnp.float32).reshape(1, LANES)

    kernel = functools.partial(board_loss_kernel, b)
    parts = pl.pallas_call(
        kernel,
        out_shape=jax.ShapeDtypeStruct((nt * 8, LANES), jnp.float32),
        grid=(nt,),
        in_specs=[
            pl.BlockSpec((N_PIECE_CLASSES, tbp, LANES), lambda i: (0, i, 0)),
            pl.BlockSpec((tbp, LANES), lambda i: (i, 0)),
            pl.BlockSpec((tile, LANES), lambda i: (i, 0)),
            pl.BlockSpec((tile, LANES), lambda i: (i, 0)),
            pl.BlockSpec((N_PIECE_CLASSES, 1, LANES), lambda i: (0, 0, 0)),
            pl.BlockSpec((1, LANES), lambda i: (0, 0)),
        ],
        out_specs=pl.BlockSpec((8, LANES), lambda i: (i, 0)),
        compiler_params=pltpu.CompilerParams(
            dimension_semantics=("parallel",),
            allow_input_fusion=[True, True, True, True, True, True],
        ),
    )(pz, lab, rz, rt, pw, rw)

    # tiny finalize in plain JAX: accumulate partials across tiles, combine the two
    # 64-lane halves of the pieces partials, then divide (divide-after-accumulate).
    p = parts.reshape(nt, 8, LANES).sum(axis=0)
    num = p[0, :N_SQUARES] + p[0, N_SQUARES:2 * N_SQUARES]
    den = p[1, :N_SQUARES] + p[1, N_SQUARES:2 * N_SQUARES]
    pieces_loss = jnp.sum(num / den)
    turn_loss = p[2, 0] / (b * N_TURN)
    castling_loss = p[3, 0] / (b * N_CASTLING)
    ep_loss = p[4, 0] / p[5, 0]
    clock_loss = p[6, 0] / (b * N_TIMERS)
    return pieces_loss + turn_loss + castling_loss + ep_loss + clock_loss


# --------------------------------------------------------------------------- #
# helpers for the reference / demo
# --------------------------------------------------------------------------- #
def _split(x):
    """tensorTo{PieceTensors,Turn,CastlingRights,EnPassant,Timers} equivalents."""
    b = x.shape[0]
    pieces = x[:, :PIECES_LEN].reshape(b, N_SQUARES, N_PIECE_CLASSES)
    turn = x[:, PIECES_LEN:PIECES_LEN + N_TURN]
    cast = x[:, PIECES_LEN + N_TURN:PIECES_LEN + N_TURN + N_CASTLING]
    ep = x[:, PIECES_LEN + N_TURN + N_CASTLING:BINARY_RANGE]
    clk = x[:, BINARY_RANGE:]
    return pieces, turn, cast, ep, clk


def generate_weights(key, n_samples=16, seq_len=8):
    """Deterministic stand-in for BoardLoss._generate_weights (synthetic 'positives').
    # TODO(synk): the original scans a real training dataset; here positives are synthetic."""
    positives = jax.random.uniform(key, (D,), minval=1.0, maxval=float(n_samples * seq_len))
    mask = jnp.concatenate([jnp.ones(BINARY_RANGE), jnp.zeros(N_TIMERS)])
    positives = positives * mask
    lengths = n_samples * seq_len
    bce_out = (lengths - positives) / (positives + 1e-8)
    ce_out = 1.0 / (positives + 1e-14)
    piece_w = ce_out[:PIECES_LEN].reshape(N_SQUARES, N_PIECE_CLASSES)
    turn_pw = bce_out[PIECES_LEN:PIECES_LEN + N_TURN]
    cast_pw = bce_out[PIECES_LEN + N_TURN:PIECES_LEN + N_TURN + N_CASTLING]
    ep_w = ce_out[PIECES_LEN + N_TURN + N_CASTLING:BINARY_RANGE]
    return (piece_w.astype(jnp.float32), turn_pw.astype(jnp.float32),
            cast_pw.astype(jnp.float32), ep_w.astype(jnp.float32))


def reference_loss(output, target, piece_w, turn_pw, cast_pw, ep_w):
    """Pure-JAX reference mirroring the PyTorch forward semantics."""
    po, to, co, eo, ko = _split(output)
    pt, tt, ct, et, kt = _split(target)

    # pieces: per-square weighted CE (PyTorch weighted-mean reduction), summed over squares
    labels = jnp.argmax(pt, axis=-1)                                   # (B, 64)
    logp = jax.nn.log_softmax(po, axis=-1)
    nll = -jnp.take_along_axis(logp, labels[..., None], axis=-1)[..., 0]
    wsel = piece_w[jnp.arange(N_SQUARES)[None, :], labels]
    pieces = jnp.sum(jnp.sum(wsel * nll, axis=0) / jnp.sum(wsel, axis=0))

    turn = jnp.mean(turn_pw * tt * _softplus(-to) + (1.0 - tt) * _softplus(to))
    cast = jnp.mean(cast_pw * ct * _softplus(-co) + (1.0 - ct) * _softplus(co))

    e_labels = jnp.argmax(et, axis=-1)
    e_logp = jax.nn.log_softmax(eo, axis=-1)
    e_nll = -jnp.take_along_axis(e_logp, e_labels[:, None], axis=-1)[:, 0]
    e_w = ep_w[e_labels]
    ep = jnp.sum(e_w * e_nll) / jnp.sum(e_w)

    clock = jnp.mean(jnp.abs(ko - kt))
    return pieces + turn + cast + ep + clock


if __name__ == "__main__":
    B = 24   # not a multiple of the tile -> exercises batch padding + validity mask
    key = jax.random.PRNGKey(0)
    kw, ko, kp, kt, kc, ke, kclk = jax.random.split(key, 7)

    piece_w, turn_pw, cast_pw, ep_w = generate_weights(kw)

    # model output: arbitrary logits / values
    output = jax.random.normal(ko, (B, D), dtype=jnp.float32)

    # target: synthetic "board" (one-hot pieces / en-passant, binary turn & castling, timers)
    piece_cls = jax.random.randint(kp, (B, N_SQUARES), 0, N_PIECE_CLASSES)
    pieces_t = jax.nn.one_hot(piece_cls, N_PIECE_CLASSES, dtype=jnp.float32).reshape(B, PIECES_LEN)
    turn_t = jax.random.bernoulli(kt, 0.5, (B, N_TURN)).astype(jnp.float32)
    cast_t = jax.random.bernoulli(kc, 0.5, (B, N_CASTLING)).astype(jnp.float32)
    ep_cls = jax.random.randint(ke, (B,), 0, N_EN_PASSANT)
    ep_t = jax.nn.one_hot(ep_cls, N_EN_PASSANT, dtype=jnp.float32)
    clk_t = jax.random.uniform(kclk, (B, N_TIMERS), minval=0.0, maxval=100.0)
    target = jnp.concatenate([pieces_t, turn_t, cast_t, ep_t, clk_t], axis=1)

    # max_batch_tile=16 -> tile=16, 2 grid steps, 8 padded rows in the last tile
    loss = board_loss(output, target, piece_w, turn_pw, cast_pw, ep_w, max_batch_tile=16)
    loss = jax.block_until_ready(loss)

    ref = reference_loss(output, target, piece_w, turn_pw, cast_pw, ep_w)
    assert jnp.isfinite(loss), "non-finite loss"
    assert jnp.allclose(loss, ref, rtol=1e-3, atol=1e-3), (loss, ref)
    print("KERNEL_OK")
</pallas_src>

<mosaic_0001>
module attributes {stable_mosaic.version = 11 : i64} {
  func.func @board_loss_kernel(%arg0: i32, %arg1: memref<13x8x128xf32, #tpu.memory_space<vmem>>, %arg2: memref<8x128xi32, #tpu.memory_space<vmem>>, %arg3: memref<16x128xf32, #tpu.memory_space<vmem>>, %arg4: memref<16x128xf32, #tpu.memory_space<vmem>>, %arg5: memref<13x1x128xf32, #tpu.memory_space<vmem>>, %arg6: memref<1x128xf32, #tpu.memory_space<vmem>>, %arg7: memref<8x128xf32, #tpu.memory_space<vmem>>) attributes {dimension_semantics = [#tpu.dimension_semantics<parallel>], iteration_bounds = array<i64: 2>, scalar_prefetch = 0 : i64, scratch_operands = 0 : i64, tpu.core_type = #tpu.core_type<tc>, window_params = [{transform_indices = @transform_0, window_bounds = array<i64: 13, 8, 128>}, {transform_indices = @transform_1, window_bounds = array<i64: 8, 128>}, {transform_indices = @transform_2, window_bounds = array<i64: 16, 128>}, {transform_indices = @transform_3, window_bounds = array<i64: 16, 128>}, {pipeline_mode = #tpu.pipeline_mode<synchronous>, transform_indices = @transform_4, window_bounds = array<i64: 13, 1, 128>}, {pipeline_mode = #tpu.pipeline_mode<synchronous>, transform_indices = @transform_5, window_bounds = array<i64: 1, 128>}, {transform_indices = @transform_6, window_bounds = array<i64: 8, 128>}]} {
    %c16_i32 = arith.constant 16 : i32
    %0 = arith.muli %arg0, %c16_i32 : i32
    %1 = tpu.iota {dimensions = array<i32: 1>} : vector<8x128xi32>
    %2 = tpu.iota {dimensions = array<i32: 0>} : vector<8x128xi32>
    %c2_i32 = arith.constant 2 : i32
    %3 = vector.broadcast %c2_i32 : i32 to vector<8x128xi32>
    %4 = arith.muli %3, %2 : vector<8x128xi32>
    %5 = vector.broadcast %0 : i32 to vector<8x128xi32>
    %6 = arith.addi %5, %4 : vector<8x128xi32>
    %c64_i32 = arith.constant 64 : i32
    %7 = vector.broadcast %c64_i32 : i32 to vector<8x128xi32>
    %8 = arith.cmpi sge, %1, %7 : vector<8x128xi32>
    %9 = arith.extui %8 : vector<8x128xi1> to vector<8x128xi32>
    %10 = arith.addi %6, %9 : vector<8x128xi32>
    %c24_i32 = arith.constant 24 : i32
    %11 = vector.broadcast %c24_i32 : i32 to vector<8x128xi32>
    %12 = arith.cmpi slt, %10, %11 : vector<8x128xi32>
    %13 = arith.extui %12 : vector<8x128xi1> to vector<8x128xi32>
    %14 = arith.sitofp %13 : vector<8x128xi32> to vector<8x128xf32>
    %c0 = arith.constant 0 : index
    %c0_0 = arith.constant 0 : index
    %c0_1 = arith.constant 0 : index
    %15 = vector.load %arg1[%c0, %c0_0, %c0_1] : memref<13x8x128xf32, #tpu.memory_space<vmem>>, vector<1x8x128xf32>
    %16 = vector.shape_cast %15 : vector<1x8x128xf32> to vector<8x128xf32>
    %c1 = arith.constant 1 : index
    %c0_2 = arith.constant 0 : index
    %c0_3 = arith.constant 0 : index
    %17 = vector.load %arg1[%c1, %c0_2, %c0_3] : memref<13x8x128xf32, #tpu.memory_space<vmem>>, vector<1x8x128xf32>
    %18 = vector.shape_cast %17 : vector<1x8x128xf32> to vector<8x128xf32>
    %19 = arith.maximumf %16, %18 : vector<8x128xf32>
    %c2 = arith.constant 2 : index
    %c0_4 = arith.constant 0 : index
    %c0_5 = arith.constant 0 : index
    %20 = vector.load %arg1[%c2, %c0_4, %c0_5] : memref<13x8x128xf32, #tpu.memory_space<vmem>>, vector<1x8x128xf32>
    %21 = vector.shape_cast %20 : vector<1x8x128xf32> to vector<8x128xf32>
    %22 = arith.maximumf %19, %21 : vector<8x128xf32>
    %c3 = arith.constant 3 : index
    %c0_6 = arith.constant 0 : index
    %c0_7 = arith.constant 0 : index
    %23 = vector.load %arg1[%c3, %c0_6, %c0_7] : memref<13x8x128xf32, #tpu.memory_space<vmem>>, vector<1x8x128xf32>
    %24 = vector.shape_cast %23 : vector<1x8x128xf32> to vector<8x128xf32>
    %25 = arith.maximumf %22, %24 : vector<8x128xf32>
    %c4 = arith.constant 4 : index
    %c0_8 = arith.constant 0 : index
    %c0_9 = arith.constant 0 : index
    %26 = vector.load %arg1[%c4, %c0_8, %c0_9] : memref<13x8x128xf32, #tpu.memory_space<vmem>>, vector<1x8x128xf32>
    %27 = vector.shape_cast %26 : vector<1x8x128xf32> to vector<8x128xf32>
    %28 = arith.maximumf %25, %27 : vector<8x128xf32>
    %c5 = arith.constant 5 : index
    %c0_10 = arith.constant 0 : index
    %c0_11 = arith.constant 0 : index
    %29 = vector.load %arg1[%c5, %c0_10, %c0_11] : memref<13x8x128xf32, #tpu.memory_space<vmem>>, vector<1x8x128xf32>
    %30 = vector.shape_cast %29 : vector<1x8x128xf32> to vector<8x128xf32>
    %31 = arith.maximumf %28, %30 : vector<8x128xf32>
    %c6 = arith.constant 6 : index
    %c0_12 = arith.constant 0 : index
    %c0_13 = arith.constant 0 : index
    %32 = vector.load %arg1[%c6, %c0_12, %c0_13] : memref<13x8x128xf32, #tpu.memory_space<vmem>>, vector<1x8x128xf32>
    %33 = vector.shape_cast %32 : vector<1x8x128xf32> to vector<8x128xf32>
    %34 = arith.maximumf %31, %33 : vector<8x128xf32>
    %c7 = arith.constant 7 : index
    %c0_14 = arith.constant 0 : index
    %c0_15 = arith.constant 0 : index
    %35 = vector.load %arg1[%c7, %c0_14, %c0_15] : memref<13x8x128xf32, #tpu.memory_space<vmem>>, vector<1x8x128xf32>
    %36 = vector.shape_cast %35 : vector<1x8x128xf32> to vector<8x128xf32>
    %37 = arith.maximumf %34, %36 : vector<8x128xf32>
    %c8 = arith.constant 8 : index
    %c0_16 = arith.constant 0 : index
    %c0_17 = arith.constant 0 : index
    %38 = vector.load %arg1[%c8, %c0_16, %c0_17] : memref<13x8x128xf32, #tpu.memory_space<vmem>>, vector<1x8x128xf32>
    %39 = vector.shape_cast %38 : vector<1x8x128xf32> to vector<8x128xf32>
    %40 = arith.maximumf %37, %39 : vector<8x128xf32>
    %c9 = arith.constant 9 : index
    %c0_18 = arith.constant 0 : index
    %c0_19 = arith.constant 0 : index
    %41 = vector.load %arg1[%c9, %c0_18, %c0_19] : memref<13x8x128xf32, #tpu.memory_space<vmem>>, vector<1x8x128xf32>
    %42 = vector.shape_cast %41 : vector<1x8x128xf32> to vector<8x128xf32>
    %43 = arith.maximumf %40, %42 : vector<8x128xf32>
    %c10 = arith.constant 10 : index
    %c0_20 = arith.constant 0 : index
    %c0_21 = arith.constant 0 : index
    %44 = vector.load %arg1[%c10, %c0_20, %c0_21] : memref<13x8x128xf32, #tpu.memory_space<vmem>>, vector<1x8x128xf32>
    %45 = vector.shape_cast %44 : vector<1x8x128xf32> to vector<8x128xf32>
    %46 = arith.maximumf %43, %45 : vector<8x128xf32>
    %c11 = arith.constant 11 : index
    %c0_22 = arith.constant 0 : index
    %c0_23 = arith.constant 0 : index
    %47 = vector.load %arg1[%c11, %c0_22, %c0_23] : memref<13x8x128xf32, #tpu.memory_space<vmem>>, vector<1x8x128xf32>
    %48 = vector.shape_cast %47 : vector<1x8x128xf32> to vector<8x128xf32>
    %49 = arith.maximumf %46, %48 : vector<8x128xf32>
    %c12 = arith.constant 12 : index
    %c0_24 = arith.constant 0 : index
    %c0_25 = arith.constant 0 : index
    %50 = vector.load %arg1[%c12, %c0_24, %c0_25] : memref<13x8x128xf32, #tpu.memory_space<vmem>>, vector<1x8x128xf32>
    %51 = vector.shape_cast %50 : vector<1x8x128xf32> to vector<8x128xf32>
    %52 = arith.maximumf %49, %51 : vector<8x128xf32>
    %c0_26 = arith.constant 0 : index
    %c0_27 = arith.constant 0 : index
    %53 = vector.load %arg2[%c0_26, %c0_27] : memref<8x128xi32, #tpu.memory_space<vmem>>, vector<8x128xi32>
    %cst = arith.constant 0.000000e+00 : f32
    %54 = vector.broadcast %cst : f32 to vector<8x128xf32>
    %cst_28 = arith.constant 0.000000e+00 : f32
    %55 = vector.broadcast %cst_28 : f32 to vector<8x128xf32>
    %cst_29 = arith.constant 0.000000e+00 : f32
    %56 = vector.broadcast %cst_29 : f32 to vector<8x128xf32>
    %c0_30 = arith.constant 0 : index
    %c0_31 = arith.constant 0 : index
    %c0_32 = arith.constant 0 : index
    %57 = vector.load %arg1[%c0_30, %c0_31, %c0_32] : memref<13x8x128xf32, #tpu.memory_space<vmem>>, vector<1x8x128xf32>
    %58 = vector.shape_cast %57 : vector<1x8x128xf32> to vector<8x128xf32>
    %59 = arith.subf %58, %52 : vector<8x128xf32>
    %60 = math.exp %59 : vector<8x128xf32>
    %61 = arith.addf %54, %60 : vector<8x128xf32>
    %c0_i32 = arith.constant 0 : i32
    %62 = vector.broadcast %c0_i32 : i32 to vector<8x128xi32>
    %63 = arith.cmpi eq, %53, %62 : vector<8x128xi32>
    %64 = arith.extui %63 : vector<8x128xi1> to vector<8x128xi32>
    %65 = arith.sitofp %64 : vector<8x128xi32> to vector<8x128xf32>
    %66 = arith.mulf %65, %58 : vector<8x128xf32>
    %67 = arith.addf %55, %66 : vector<8x128xf32>
    %c0_33 = arith.constant 0 : index
    %c0_34 = arith.constant 0 : index
    %c0_35 = arith.constant 0 : index
    %68 = vector.load %arg5[%c0_33, %c0_34, %c0_35] : memref<13x1x128xf32, #tpu.memory_space<vmem>>, vector<1x1x128xf32>
    %69 = vector.shape_cast %68 : vector<1x1x128xf32> to vector<1x128xf32>
    %70 = vector.broadcast %69 : vector<1x128xf32> to vector<8x128xf32>
    %71 = arith.mulf %65, %70 : vector<8x128xf32>
    %72 = arith.addf %56, %71 : vector<8x128xf32>
    %c1_36 = arith.constant 1 : index
    %c0_37 = arith.constant 0 : index
    %c0_38 = arith.constant 0 : index
    %73 = vector.load %arg1[%c1_36, %c0_37, %c0_38] : memref<13x8x128xf32, #tpu.memory_space<vmem>>, vector<1x8x128xf32>
    %74 = vector.shape_cast %73 : vector<1x8x128xf32> to vector<8x128xf32>
    %75 = arith.subf %74, %52 : vector<8x128xf32>
    %76 = math.exp %75 : vector<8x128xf32>
    %77 = arith.addf %61, %76 : vector<8x128xf32>
    %c1_i32 = arith.constant 1 : i32
    %78 = vector.broadcast %c1_i32 : i32 to vector<8x128xi32>
    %79 = arith.cmpi eq, %53, %78 : vector<8x128xi32>
    %80 = arith.extui %79 : vector<8x128xi1> to vector<8x128xi32>
    %81 = arith.sitofp %80 : vector<8x128xi32> to vector<8x128xf32>
    %82 = arith.mulf %81, %74 : vector<8x128xf32>
    %83 = arith.addf %67, %82 : vector<8x128xf32>
    %c1_39 = arith.constant 1 : index
    %c0_40 = arith.constant 0 : index
    %c0_41 = arith.constant 0 : index
    %84 = vector.load %arg5[%c1_39, %c0_40, %c0_41] : memref<13x1x128xf32, #tpu.memory_space<vmem>>, vector<1x1x128xf32>
    %85 = vector.shape_cast %84 : vector<1x1x128xf32> to vector<1x128xf32>
    %86 = vector.broadcast %85 : vector<1x128xf32> to vector<8x128xf32>
    %87 = arith.mulf %81, %86 : vector<8x128xf32>
    %88 = arith.addf %72, %87 : vector<8x128xf32>
    %c2_42 = arith.constant 2 : index
    %c0_43 = arith.constant 0 : index
    %c0_44 = arith.constant 0 : index
    %89 = vector.load %arg1[%c2_42, %c0_43, %c0_44] : memref<13x8x128xf32, #tpu.memory_space<vmem>>, vector<1x8x128xf32>
    %90 = vector.shape_cast %89 : vector<1x8x128xf32> to vector<8x128xf32>
    %91 = arith.subf %90, %52 : vector<8x128xf32>
    %92 = math.exp %91 : vector<8x128xf32>
    %93 = arith.addf %77, %92 : vector<8x128xf32>
    %c2_i32_45 = arith.constant 2 : i32
    %94 = vector.broadcast %c2_i32_45 : i32 to vector<8x128xi32>
    %95 = arith.cmpi eq, %53, %94 : vector<8x128xi32>
    %96 = arith.extui %95 : vector<8x128xi1> to vector<8x128xi32>
    %97 = arith.sitofp %96 : vector<8x128xi32> to vector<8x128xf32>
    %98 = arith.mulf %97, %90 : vector<8x128xf32>
    %99 = arith.addf %83, %98 : vector<8x128xf32>
    %c2_46 = arith.constant 2 : index
    %c0_47 = arith.constant 0 : index
    %c0_48 = arith.constant 0 : index
    %100 = vector.load %arg5[%c2_46, %c0_47, %c0_48] : memref<13x1x128xf32, #tpu.memory_space<vmem>>, vector<1x1x128xf32>
    %101 = vector.shape_cast %100 : vector<1x1x128xf32> to vector<1x128xf32>
    %102 = vector.broadcast %101 : vector<1x128xf32> to vector<8x128xf32>
    %103 = arith.mulf %97, %102 : vector<8x128xf32>
    %104 = arith.addf %88, %103 : vector<8x128xf32>
    %c3_49 = arith.constant 3 : index
    %c0_50 = arith.constant 0 : index
    %c0_51 = arith.constant 0 : index
    %105 = vector.load %arg1[%c3_49, %c0_50, %c0_51] : memref<13x8x128xf32, #tpu.memory_space<vmem>>, vector<1x8x128xf32>
    %106 = vector.shape_cast %105 : vector<1x8x128xf32> to vector<8x128xf32>
    %107 = arith.subf %106, %52 : vector<8x128xf32>
    %108 = math.exp %107 : vector<8x128xf32>
    %109 = arith.addf %93, %108 : vector<8x128xf32>
    %c3_i32 = arith.constant 3 : i32
    %110 = vector.broadcast %c3_i32 : i32 to vector<8x128xi32>
    %111 = arith.cmpi eq, %53, %110 : vector<8x128xi32>
    %112 = arith.extui %111 : vector<8x128xi1> to vector<8x128xi32>
    %113 = arith.sitofp %112 : vector<8x128xi32> to vector<8x128xf32>
    %114 = arith.mulf %113, %106 : vector<8x128xf32>
    %115 = arith.addf %99, %114 : vector<8x128xf32>
    %c3_52 = arith.constant 3 : index
    %c0_53 = arith.constant 0 : index
    %c0_54 = arith.constant 0 : index
    %116 = vector.load %arg5[%c3_52, %c0_53, %c0_54] : memref<13x1x128xf32, #tpu.memory_space<vmem>>, vector<1x1x128xf32>
    %117 = vector.shape_cast %116 : vector<1x1x128xf32> to vector<1x128xf32>
    %118 = vector.broadcast %117 : vector<1x128xf32> to vector<8x128xf32>
    %119 = arith.mulf %113, %118 : vector<8x128xf32>
    %120 = arith.addf %104, %119 : vector<8x128xf32>
    %c4_55 = arith.constant 4 : index
    %c0_56 = arith.constant 0 : index
    %c0_57 = arith.constant 0 : index
    %121 = vector.load %arg1[%c4_55, %c0_56, %c0_57] : memref<13x8x128xf32, #tpu.memory_space<vmem>>, vector<1x8x128xf32>
    %122 = vector.shape_cast %121 : vector<1x8x128xf32> to vector<8x128xf32>
    %123 = arith.subf %122, %52 : vector<8x128xf32>
    %124 = math.exp %123 : vector<8x128xf32>
    %125 = arith.addf %109, %124 : vector<8x128xf32>
    %c4_i32 = arith.constant 4 : i32
    %126 = vector.broadcast %c4_i32 : i32 to vector<8x128xi32>
    %127 = arith.cmpi eq, %53, %126 : vector<8x128xi32>
    %128 = arith.extui %127 : vector<8x128xi1> to vector<8x128xi32>
    %129 = arith.sitofp %128 : vector<8x128xi32> to vector<8x128xf32>
    %130 = arith.mulf %129, %122 : vector<8x128xf32>
    %131 = arith.addf %115, %130 : vector<8x128xf32>
    %c4_58 = arith.constant 4 : index
    %c0_59 = arith.constant 0 : index
    %c0_60 = arith.constant 0 : index
    %132 = vector.load %arg5[%c4_58, %c0_59, %c0_60] : memref<13x1x128xf32, #tpu.memory_space<vmem>>, vector<1x1x128xf32>
    %133 = vector.shape_cast %132 : vector<1x1x128xf32> to vector<1x128xf32>
    %134 = vector.broadcast %133 : vector<1x128xf32> to vector<8x128xf32>
    %135 = arith.mulf %129, %134 : vector<8x128xf32>
    %136 = arith.addf %120, %135 : vector<8x128xf32>
    %c5_61 = arith.constant 5 : index
    %c0_62 = arith.constant 0 : index
    %c0_63 = arith.constant 0 : index
    %137 = vector.load %arg1[%c5_61, %c0_62, %c0_63] : memref<13x8x128xf32, #tpu.memory_space<vmem>>, vector<1x8x128xf32>
    %138 = vector.shape_cast %137 : vector<1x8x128xf32> to vector<8x128xf32>
    %139 = arith.subf %138, %52 : vector<8x128xf32>
    %140 = math.exp %139 : vector<8x128xf32>
    %141 = arith.addf %125, %140 : vector<8x128xf32>
    %c5_i32 = arith.constant 5 : i32
    %142 = vector.broadcast %c5_i32 : i32 to vector<8x128xi32>
    %143 = arith.cmpi eq, %53, %142 : vector<8x128xi32>
    %144 = arith.extui %143 : vector<8x128xi1> to vector<8x128xi32>
    %145 = arith.sitofp %144 : vector<8x128xi32> to vector<8x128xf32>
    %146 = arith.mulf %145, %138 : vector<8x128xf32>
    %147 = arith.addf %131, %146 : vector<8x128xf32>
    %c5_64 = arith.constant 5 : index
    %c0_65 = arith.constant 0 : index
    %c0_66 = arith.constant 0 : index
    %148 = vector.load %arg5[%c5_64, %c0_65, %c0_66] : memref<13x1x128xf32, #tpu.memory_space<vmem>>, vector<1x1x128xf32>
    %149 = vector.shape_cast %148 : vector<1x1x128xf32> to vector<1x128xf32>
    %150 = vector.broadcast %149 : vector<1x128xf32> to vector<8x128xf32>
    %151 = arith.mulf %145, %150 : vector<8x128xf32>
    %152 = arith.addf %136, %151 : vector<8x128xf32>
    %c6_67 = arith.constant 6 : index
    %c0_68 = arith.constant 0 : index
    %c0_69 = arith.constant 0 : index
    %153 = vector.load %arg1[%c6_67, %c0_68, %c0_69] : memref<13x8x128xf32, #tpu.memory_space<vmem>>, vector<1x8x128xf32>
    %154 = vector.shape_cast %153 : vector<1x8x128xf32> to vector<8x128xf32>
    %155 = arith.subf %154, %52 : vector<8x128xf32>
    %156 = math.exp %155 : vector<8x128xf32>
    %157 = arith.addf %141, %156 : vector<8x128xf32>
    %c6_i32 = arith.constant 6 : i32
    %158 = vector.broadcast %c6_i32 : i32 to vector<8x128xi32>
    %159 = arith.cmpi eq, %53, %158 : vector<8x128xi32>
    %160 = arith.extui %159 : vector<8x128xi1> to vector<8x128xi32>
    %161 = arith.sitofp %160 : vector<8x128xi32> to vector<8x128xf32>
    %162 = arith.mulf %161, %154 : vector<8x128xf32>
    %163 = arith.addf %147, %162 : vector<8x128xf32>
    %c6_70 = arith.constant 6 : index
    %c0_71 = arith.constant 0 : index
    %c0_72 = arith.constant 0 : index
    %164 = vector.load %arg5[%c6_70, %c0_71, %c0_72] : memref<13x1x128xf32, #tpu.memory_space<vmem>>, vector<1x1x128xf32>
    %165 = vector.shape_cast %164 : vector<1x1x128xf32> to vector<1x128xf32>
    %166 = vector.broadcast %165 : vector<1x128xf32> to vector<8x128xf32>
    %167 = arith.mulf %161, %166 : vector<8x128xf32>
    %168 = arith.addf %152, %167 : vector<8x128xf32>
    %c7_73 = arith.constant 7 : index
    %c0_74 = arith.constant 0 : index
    %c0_75 = arith.constant 0 : index
    %169 = vector.load %arg1[%c7_73, %c0_74, %c0_75] : memref<13x8x128xf32, #tpu.memory_space<vmem>>, vector<1x8x128xf32>
    %170 = vector.shape_cast %169 : vector<1x8x128xf32> to vector<8x128xf32>
    %171 = arith.subf %170, %52 : vector<8x128xf32>
    %172 = math.exp %171 : vector<8x128xf32>
    %173 = arith.addf %157, %172 : vector<8x128xf32>
    %c7_i32 = arith.constant 7 : i32
    %174 = vector.broadcast %c7_i32 : i32 to vector<8x128xi32>
    %175 = arith.cmpi eq, %53, %174 : vector<8x128xi32>
    %176 = arith.extui %175 : vector<8x128xi1> to vector<8x128xi32>
    %177 = arith.sitofp %176 : vector<8x128xi32> to vector<8x128xf32>
    %178 = arith.mulf %177, %170 : vector<8x128xf32>
    %179 = arith.addf %163, %178 : vector<8x128xf32>
    %c7_76 = arith.constant 7 : index
    %c0_77 = arith.constant 0 : index
    %c0_78 = arith.constant 0 : index
    %180 = vector.load %arg5[%c7_76, %c0_77, %c0_78] : memref<13x1x128xf32, #tpu.memory_space<vmem>>, vector<1x1x128xf32>
    %181 = vector.shape_cast %180 : vector<1x1x128xf32> to vector<1x128xf32>
    %182 = vector.broadcast %181 : vector<1x128xf32> to vector<8x128xf32>
    %183 = arith.mulf %177, %182 : vector<8x128xf32>
    %184 = arith.addf %168, %183 : vector<8x128xf32>
    %c8_79 = arith.constant 8 : index
    %c0_80 = arith.constant 0 : index
    %c0_81 = arith.constant 0 : index
    %185 = vector.load %arg1[%c8_79, %c0_80, %c0_81] : memref<13x8x128xf32, #tpu.memory_space<vmem>>, vector<1x8x128xf32>
    %186 = vector.shape_cast %185 : vector<1x8x128xf32> to vector<8x128xf32>
    %187 = arith.subf %186, %52 : vector<8x128xf32>
    %188 = math.exp %187 : vector<8x128xf32>
    %189 = arith.addf %173, %188 : vector<8x128xf32>
    %c8_i32 = arith.constant 8 : i32
    %190 = vector.broadcast %c8_i32 : i32 to vector<8x128xi32>
    %191 = arith.cmpi eq, %53, %190 : vector<8x128xi32>
    %192 = arith.extui %191 : vector<8x128xi1> to vector<8x128xi32>
    %193 = arith.sitofp %192 : vector<8x128xi32> to vector<8x128xf32>
    %194 = arith.mulf %193, %186 : vector<8x128xf32>
    %195 = arith.addf %179, %194 : vector<8x128xf32>
    %c8_82 = arith.constant 8 : index
    %c0_83 = arith.constant 0 : index
    %c0_84 = arith.constant 0 : index
    %196 = vector.load %arg5[%c8_82, %c0_83, %c0_84] : memref<13x1x128xf32, #tpu.memory_space<vmem>>, vector<1x1x128xf32>
    %197 = vector.shape_cast %196 : vector<1x1x128xf32> to vector<1x128xf32>
    %198 = vector.broadcast %197 : vector<1x128xf32> to vector<8x128xf32>
    %199 = arith.mulf %193, %198 : vector<8x128xf32>
    %200 = arith.addf %184, %199 : vector<8x128xf32>
    %c9_85 = arith.constant 9 : index
    %c0_86 = arith.constant 0 : index
    %c0_87 = arith.constant 0 : index
    %201 = vector.load %arg1[%c9_85, %c0_86, %c0_87] : memref<13x8x128xf32, #tpu.memory_space<vmem>>, vector<1x8x128xf32>
    %202 = vector.shape_cast %201 : vector<1x8x128xf32> to vector<8x128xf32>
    %203 = arith.subf %202, %52 : vector<8x128xf32>
    %204 = math.exp %203 : vector<8x128xf32>
    %205 = arith.addf %189, %204 : vector<8x128xf32>
    %c9_i32 = arith.constant 9 : i32
    %206 = vector.broadcast %c9_i32 : i32 to vector<8x128xi32>
    %207 = arith.cmpi eq, %53, %206 : vector<8x128xi32>
    %208 = arith.extui %207 : vector<8x128xi1> to vector<8x128xi32>
    %209 = arith.sitofp %208 : vector<8x128xi32> to vector<8x128xf32>
    %210 = arith.mulf %209, %202 : vector<8x128xf32>
    %211 = arith.addf %195, %210 : vector<8x128xf32>
    %c9_88 = arith.constant 9 : index
    %c0_89 = arith.constant 0 : index
    %c0_90 = arith.constant 0 : index
    %212 = vector.load %arg5[%c9_88, %c0_89, %c0_90] : memref<13x1x128xf32, #tpu.memory_space<vmem>>, vector<1x1x128xf32>
    %213 = vector.shape_cast %212 : vector<1x1x128xf32> to vector<1x128xf32>
    %214 = vector.broadcast %213 : vector<1x128xf32> to vector<8x128xf32>
    %215 = arith.mulf %209, %214 : vector<8x128xf32>
    %216 = arith.addf %200, %215 : vector<8x128xf32>
    %c10_91 = arith.constant 10 : index
    %c0_92 = arith.constant 0 : index
    %c0_93 = arith.constant 0 : index
    %217 = vector.load %arg1[%c10_91, %c0_92, %c0_93] : memref<13x8x128xf32, #tpu.memory_space<vmem>>, vector<1x8x128xf32>
    %218 = vector.shape_cast %217 : vector<1x8x128xf32> to vector<8x128xf32>
    %219 = arith.subf %218, %52 : vector<8x128xf32>
    %220 = math.exp %219 : vector<8x128xf32>
    %221 = arith.addf %205, %220 : vector<8x128xf32>
    %c10_i32 = arith.constant 10 : i32
    %222 = vector.broadcast %c10_i32 : i32 to vector<8x128xi32>
    %223 = arith.cmpi eq, %53, %222 : vector<8x128xi32>
    %224 = arith.extui %223 : vector<8x128xi1> to vector<8x128xi32>
    %225 = arith.sitofp %224 : vector<8x128xi32> to vector<8x128xf32>
    %226 = arith.mulf %225, %218 : vector<8x128xf32>
    %227 = arith.addf %211, %226 : vector<8x128xf32>
    %c10_94 = arith.constant 10 : index
    %c0_95 = arith.constant 0 : index
    %c0_96 = arith.constant 0 : index
    %228 = vector.load %arg5[%c10_94, %c0_95, %c0_96] : memref<13x1x128xf32, #tpu.memory_space<vmem>>, vector<1x1x128xf32>
    %229 = vector.shape_cast %228 : vector<1x1x128xf32> to vector<1x128xf32>
    %230 = vector.broadcast %229 : vector<1x128xf32> to vector<8x128xf32>
    %231 = arith.mulf %225, %230 : vector<8x128xf32>
    %232 = arith.addf %216, %231 : vector<8x128xf32>
    %c11_97 = arith.constant 11 : index
    %c0_98 = arith.constant 0 : index
    %c0_99 = arith.constant 0 : index
    %233 = vector.load %arg1[%c11_97, %c0_98, %c0_99] : memref<13x8x128xf32, #tpu.memory_space<vmem>>, vector<1x8x128xf32>
    %234 = vector.shape_cast %233 : vector<1x8x128xf32> to vector<8x128xf32>
    %235 = arith.subf %234, %52 : vector<8x128xf32>
    %236 = math.exp %235 : vector<8x128xf32>
    %237 = arith.addf %221, %236 : vector<8x128xf32>
    %c11_i32 = arith.constant 11 : i32
    %238 = vector.broadcast %c11_i32 : i32 to vector<8x128xi32>
    %239 = arith.cmpi eq, %53, %238 : vector<8x128xi32>
    %240 = arith.extui %239 : vector<8x128xi1> to vector<8x128xi32>
    %241 = arith.sitofp %240 : vector<8x128xi32> to vector<8x128xf32>
    %242 = arith.mulf %241, %234 : vector<8x128xf32>
    %243 = arith.addf %227, %242 : vector<8x128xf32>
    %c11_100 = arith.constant 11 : index
    %c0_101 = arith.constant 0 : index
    %c0_102 = arith.constant 0 : index
    %244 = vector.load %arg5[%c11_100, %c0_101, %c0_102] : memref<13x1x128xf32, #tpu.memory_space<vmem>>, vector<1x1x128xf32>
    %245 = vector.shape_cast %244 : vector<1x1x128xf32> to vector<1x128xf32>
    %246 = vector.broadcast %245 : vector<1x128xf32> to vector<8x128xf32>
    %247 = arith.mulf %241, %246 : vector<8x128xf32>
    %248 = arith.addf %232, %247 : vector<8x128xf32>
    %c12_103 = arith.constant 12 : index
    %c0_104 = arith.constant 0 : index
    %c0_105 = arith.constant 0 : index
    %249 = vector.load %arg1[%c12_103, %c0_104, %c0_105] : memref<13x8x128xf32, #tpu.memory_space<vmem>>, vector<1x8x128xf32>
    %250 = vector.shape_cast %249 : vector<1x8x128xf32> to vector<8x128xf32>
    %251 = arith.subf %250, %52 : vector<8x128xf32>
    %252 = math.exp %251 : vector<8x128xf32>
    %253 = arith.addf %237, %252 : vector<8x128xf32>
    %c12_i32 = arith.constant 12 : i32
    %254 = vector.broadcast %c12_i32 : i32 to vector<8x128xi32>
    %255 = arith.cmpi eq, %53, %254 : vector<8x128xi32>
    %256 = arith.extui %255 : vector<8x128xi1> to vector<8x128xi32>
    %257 = arith.sitofp %256 : vector<8x128xi32> to vector<8x128xf32>
    %258 = arith.mulf %257, %250 : vector<8x128xf32>
    %259 = arith.addf %243, %258 : vector<8x128xf32>
    %c12_106 = arith.constant 12 : index
    %c0_107 = arith.constant 0 : index
    %c0_108 = arith.constant 0 : index
    %260 = vector.load %arg5[%c12_106, %c0_107, %c0_108] : memref<13x1x128xf32, #tpu.memory_space<vmem>>, vector<1x1x128xf32>
    %261 = vector.shape_cast %260 : vector<1x1x128xf32> to vector<1x128xf32>
    %262 = vector.broadcast %261 : vector<1x128xf32> to vector<8x128xf32>
    %263 = arith.mulf %257, %262 : vector<8x128xf32>
    %264 = arith.addf %248, %263 : vector<8x128xf32>
    %265 = math.log %253 : vector<8x128xf32>
    %266 = arith.addf %265, %52 : vector<8x128xf32>
    %267 = arith.mulf %264, %14 : vector<8x128xf32>
    %268 = arith.subf %266, %259 : vector<8x128xf32>
    %269 = arith.mulf %267, %268 : vector<8x128xf32>
    %cst_109 = arith.constant dense<0.000000e+00> : vector<128xf32>
    %270 = vector.multi_reduction <add>, %269, %cst_109 [0] : vector<8x128xf32> to vector<128xf32>
    %271 = vector.shape_cast %270 : vector<128xf32> to vector<1x128xf32>
    %cst_110 = arith.constant dense<0.000000e+00> : vector<128xf32>
    %272 = vector.multi_reduction <add>, %267, %cst_110 [0] : vector<8x128xf32> to vector<128xf32>
    %273 = vector.shape_cast %272 : vector<128xf32> to vector<1x128xf32>
    %c0_111 = arith.constant 0 : index
    %c0_112 = arith.constant 0 : index
    %274 = vector.load %arg3[%c0_111, %c0_112] : memref<16x128xf32, #tpu.memory_space<vmem>>, vector<16x128xf32>
    %c0_113 = arith.constant 0 : index
    %c0_114 = arith.constant 0 : index
    %275 = vector.load %arg4[%c0_113, %c0_114] : memref<16x128xf32, #tpu.memory_space<vmem>>, vector<16x128xf32>
    %c0_115 = arith.constant 0 : index
    %c0_116 = arith.constant 0 : index
    %276 = vector.load %arg6[%c0_115, %c0_116] : memref<1x128xf32, #tpu.memory_space<vmem>>, vector<1x128xf32>
    %277 = tpu.iota {dimensions = array<i32: 1>} : vector<16x128xi32>
    %278 = tpu.iota {dimensions = array<i32: 0>} : vector<16x128xi32>
    %279 = vector.broadcast %0 : i32 to vector<16x128xi32>
    %280 = arith.addi %279, %278 : vector<16x128xi32>
    %c24_i32_117 = arith.constant 24 : i32
    %281 = vector.broadcast %c24_i32_117 : i32 to vector<16x128xi32>
    %282 = arith.cmpi slt, %280, %281 : vector<16x128xi32>
    %283 = arith.extui %282 : vector<16x128xi1> to vector<16x128xi32>
    %284 = arith.sitofp %283 : vector<16x128xi32> to vector<16x128xf32>
    %c1_i32_118 = arith.constant 1 : i32
    %285 = vector.broadcast %c1_i32_118 : i32 to vector<16x128xi32>
    %286 = arith.cmpi slt, %277, %285 : vector<16x128xi32>
    %c1_i32_119 = arith.constant 1 : i32
    %287 = vector.broadcast %c1_i32_119 : i32 to vector<16x128xi32>
    %288 = arith.cmpi sge, %277, %287 : vector<16x128xi32>
    %c5_i32_120 = arith.constant 5 : i32
    %289 = vector.broadcast %c5_i32_120 : i32 to vector<16x128xi32>
    %290 = arith.cmpi slt, %277, %289 : vector<16x128xi32>
    %291 = arith.andi %288, %290 : vector<16x128xi1>
    %c5_i32_121 = arith.constant 5 : i32
    %292 = vector.broadcast %c5_i32_121 : i32 to vector<16x128xi32>
    %293 = arith.cmpi sge, %277, %292 : vector<16x128xi32>
    %c70_i32 = arith.constant 70 : i32
    %294 = vector.broadcast %c70_i32 : i32 to vector<16x128xi32>
    %295 = arith.cmpi slt, %277, %294 : vector<16x128xi32>
    %296 = arith.andi %293, %295 : vector<16x128xi1>
    %c70_i32_122 = arith.constant 70 : i32
    %297 = vector.broadcast %c70_i32_122 : i32 to vector<16x128xi32>
    %298 = arith.cmpi sge, %277, %297 : vector<16x128xi32>
    %c72_i32 = arith.constant 72 : i32
    %299 = vector.broadcast %c72_i32 : i32 to vector<16x128xi32>
    %300 = arith.cmpi slt, %277, %299 : vector<16x128xi32>
    %301 = arith.andi %298, %300 : vector<16x128xi1>
    %302 = vector.broadcast %276 : vector<1x128xf32> to vector<16x128xf32>
    %303 = arith.mulf %302, %275 : vector<16x128xf32>
    %cst_123 = arith.constant 0.000000e+00 : f32
    %304 = vector.broadcast %cst_123 : f32 to vector<16x128xf32>
    %305 = arith.subf %304, %274 : vector<16x128xf32>
    %cst_124 = arith.constant 0.000000e+00 : f32
    %306 = vector.broadcast %cst_124 : f32 to vector<16x128xf32>
    %307 = arith.maximumf %305, %306 : vector<16x128xf32>
    %308 = math.absf %305 : vector<16x128xf32>
    %cst_125 = arith.constant 0.000000e+00 : f32
    %309 = vector.broadcast %cst_125 : f32 to vector<16x128xf32>
    %310 = arith.subf %309, %308 : vector<16x128xf32>
    %311 = math.exp %310 : vector<16x128xf32>
    %cst_126 = arith.constant 1.000000e+00 : f32
    %312 = vector.broadcast %cst_126 : f32 to vector<16x128xf32>
    %313 = arith.addf %312, %311 : vector<16x128xf32>
    %314 = math.log %313 : vector<16x128xf32>
    %315 = arith.addf %307, %314 : vector<16x128xf32>
    %316 = arith.mulf %303, %315 : vector<16x128xf32>
    %cst_127 = arith.constant 1.000000e+00 : f32
    %317 = vector.broadcast %cst_127 : f32 to vector<16x128xf32>
    %318 = arith.subf %317, %275 : vector<16x128xf32>
    %cst_128 = arith.constant 0.000000e+00 : f32
    %319 = vector.broadcast %cst_128 : f32 to vector<16x128xf32>
    %320 = arith.maximumf %274, %319 : vector<16x128xf32>
    %321 = math.absf %274 : vector<16x128xf32>
    %cst_129 = arith.constant 0.000000e+00 : f32
    %322 = vector.broadcast %cst_129 : f32 to vector<16x128xf32>
    %323 = arith.subf %322, %321 : vector<16x128xf32>
    %324 = math.exp %323 : vector<16x128xf32>
    %cst_130 = arith.constant 1.000000e+00 : f32
    %325 = vector.broadcast %cst_130 : f32 to vector<16x128xf32>
    %326 = arith.addf %325, %324 : vector<16x128xf32>
    %327 = math.log %326 : vector<16x128xf32>
    %328 = arith.addf %320, %327 : vector<16x128xf32>
    %329 = arith.mulf %318, %328 : vector<16x128xf32>
    %330 = arith.addf %316, %329 : vector<16x128xf32>
    %331 = arith.mulf %330, %284 : vector<16x128xf32>
    %cst_131 = arith.constant 0.000000e+00 : f32
    %332 = vector.broadcast %cst_131 : f32 to vector<16x128xf32>
    %333 = arith.select %286, %331, %332 : vector<16x128xi1>, vector<16x128xf32>
    %334 = vector.shape_cast %333 : vector<16x128xf32> to vector<1x16x128xf32>
    %cst_132 = arith.constant dense<0.000000e+00> : vector<1xf32>
    %335 = vector.multi_reduction <add>, %334, %cst_132 [1, 2] : vector<1x16x128xf32> to vector<1xf32>
    %336 = vector.shape_cast %335 : vector<1xf32> to vector<1x1x1xf32>
    %337 = vector.extract %336[0, 0, 0] : f32 from vector<1x1x1xf32>
    %cst_133 = arith.constant 0.000000e+00 : f32
    %338 = vector.broadcast %cst_133 : f32 to vector<16x128xf32>
    %339 = arith.select %291, %331, %338 : vector<16x128xi1>, vector<16x128xf32>
    %340 = vector.shape_cast %339 : vector<16x128xf32> to vector<1x16x128xf32>
    %cst_134 = arith.constant dense<0.000000e+00> : vector<1xf32>
    %341 = vector.multi_reduction <add>, %340, %cst_134 [1, 2] : vector<1x16x128xf32> to vector<1xf32>
    %342 = vector.shape_cast %341 : vector<1xf32> to vector<1x1x1xf32>
    %343 = vector.extract %342[0, 0, 0] : f32 from vector<1x1x1xf32>
    %344 = arith.subf %274, %275 : vector<16x128xf32>
    %345 = math.absf %344 : vector<16x128xf32>
    %346 = arith.mulf %345, %284 : vector<16x128xf32>
    %cst_135 = arith.constant 0.000000e+00 : f32
    %347 = vector.broadcast %cst_135 : f32 to vector<16x128xf32>
    %348 = arith.select %301, %346, %347 : vector<16x128xi1>, vector<16x128xf32>
    %349 = vector.shape_cast %348 : vector<16x128xf32> to vector<1x16x128xf32>
    %cst_136 = arith.constant dense<0.000000e+00> : vector<1xf32>
    %350 = vector.multi_reduction <add>, %349, %cst_136 [1, 2] : vector<1x16x128xf32> to vector<1xf32>
    %351 = vector.shape_cast %350 : vector<1xf32> to vector<1x1x1xf32>
    %352 = vector.extract %351[0, 0, 0] : f32 from vector<1x1x1xf32>
    %cst_137 = arith.constant -1.000000e+30 : f32
    %353 = vector.broadcast %cst_137 : f32 to vector<16x128xf32>
    %354 = arith.select %296, %274, %353 : vector<16x128xi1>, vector<16x128xf32>
    %cst_138 = arith.constant -1.000000e+30 : f32
    %355 = vector.broadcast %cst_138 : f32 to vector<16x128xf32>
    %356 = arith.select %296, %275, %355 : vector<16x128xi1>, vector<16x128xf32>
    %cst_139 = arith.constant 0.000000e+00 : f32
    %357 = vector.shape_cast %276 : vector<1x128xf32> to vector<1x128xf32>
    %358 = vector.broadcast %357 : vector<1x128xf32> to vector<16x128xf32>
    %359 = vector.broadcast %cst_139 : f32 to vector<16x128xf32>
    %360 = arith.select %296, %358, %359 : vector<16x128xi1>, vector<16x128xf32>
    %361 = arith.mulf %360, %284 : vector<16x128xf32>
    %362 = arith.sitofp %277 : vector<16x128xi32> to vector<16x128xf32>
    %cst_140 = arith.constant dense<0xFF800000> : vector<16xf32>
    %363 = vector.multi_reduction <maximumf>, %356, %cst_140 [1] : vector<16x128xf32> to vector<16xf32>
    %364 = vector.shape_cast %363 : vector<16xf32> to vector<16x1xf32>
    %365 = vector.broadcast %364 : vector<16x1xf32> to vector<16x128xf32>
    %366 = arith.cmpf oge, %356, %365 : vector<16x128xf32>
    %cst_141 = arith.constant 1.000000e+09 : f32
    %367 = vector.broadcast %cst_141 : f32 to vector<16x128xf32>
    %368 = arith.select %366, %362, %367 : vector<16x128xi1>, vector<16x128xf32>
    %cst_142 = arith.constant dense<0x7F800000> : vector<16xf32>
    %369 = vector.multi_reduction <minimumf>, %368, %cst_142 [1] : vector<16x128xf32> to vector<16xf32>
    %370 = vector.shape_cast %369 : vector<16xf32> to vector<16x1xf32>
    %371 = vector.broadcast %370 : vector<16x1xf32> to vector<16x128xf32>
    %372 = arith.cmpf oeq, %362, %371 : vector<16x128xf32>
    %373 = arith.extui %372 : vector<16x128xi1> to vector<16x128xi32>
    %374 = arith.sitofp %373 : vector<16x128xi32> to vector<16x128xf32>
    %cst_143 = arith.constant dense<0xFF800000> : vector<16xf32>
    %375 = vector.multi_reduction <maximumf>, %354, %cst_143 [1] : vector<16x128xf32> to vector<16xf32>
    %376 = vector.shape_cast %375 : vector<16xf32> to vector<16x1xf32>
    %377 = vector.broadcast %376 : vector<16x1xf32> to vector<16x128xf32>
    %378 = arith.subf %354, %377 : vector<16x128xf32>
    %379 = math.exp %378 : vector<16x128xf32>
    %cst_144 = arith.constant dense<0.000000e+00> : vector<16xf32>
    %380 = vector.multi_reduction <add>, %379, %cst_144 [1] : vector<16x128xf32> to vector<16xf32>
    %381 = vector.shape_cast %380 : vector<16xf32> to vector<16x1xf32>
    %382 = math.log %381 : vector<16x1xf32>
    %383 = arith.addf %382, %376 : vector<16x1xf32>
    %384 = arith.mulf %374, %354 : vector<16x128xf32>
    %cst_145 = arith.constant dense<0.000000e+00> : vector<16xf32>
    %385 = vector.multi_reduction <add>, %384, %cst_145 [1] : vector<16x128xf32> to vector<16xf32>
    %386 = vector.shape_cast %385 : vector<16xf32> to vector<16x1xf32>
    %387 = arith.mulf %374, %361 : vector<16x128xf32>
    %cst_146 = arith.constant dense<0.000000e+00> : vector<16xf32>
    %388 = vector.multi_reduction <add>, %387, %cst_146 [1] : vector<16x128xf32> to vector<16xf32>
    %389 = vector.shape_cast %388 : vector<16xf32> to vector<16x1xf32>
    %390 = arith.subf %383, %386 : vector<16x1xf32>
    %391 = arith.mulf %389, %390 : vector<16x1xf32>
    %392 = vector.shape_cast %391 : vector<16x1xf32> to vector<1x16x1xf32>
    %cst_147 = arith.constant dense<0.000000e+00> : vector<1xf32>
    %393 = vector.multi_reduction <add>, %392, %cst_147 [1, 2] : vector<1x16x1xf32> to vector<1xf32>
    %394 = vector.shape_cast %393 : vector<1xf32> to vector<1x1x1xf32>
    %395 = vector.extract %394[0, 0, 0] : f32 from vector<1x1x1xf32>
    %396 = vector.shape_cast %389 : vector<16x1xf32> to vector<1x16x1xf32>
    %cst_148 = arith.constant dense<0.000000e+00> : vector<1xf32>
    %397 = vector.multi_reduction <add>, %396, %cst_148 [1, 2] : vector<1x16x1xf32> to vector<1xf32>
    %398 = vector.shape_cast %397 : vector<1xf32> to vector<1x1x1xf32>
    %399 = vector.extract %398[0, 0, 0] : f32 from vector<1x1x1xf32>
    %cst_149 = arith.constant 0.000000e+00 : f32
    %400 = vector.broadcast %cst_149 : f32 to vector<1x128xf32>
    %401 = vector.broadcast %337 : f32 to vector<1x128xf32>
    %402 = arith.addf %400, %401 : vector<1x128xf32>
    %403 = vector.broadcast %343 : f32 to vector<1x128xf32>
    %404 = arith.addf %400, %403 : vector<1x128xf32>
    %405 = vector.broadcast %395 : f32 to vector<1x128xf32>
    %406 = arith.addf %400, %405 : vector<1x128xf32>
    %407 = vector.broadcast %399 : f32 to vector<1x128xf32>
    %408 = arith.addf %400, %407 : vector<1x128xf32>
    %409 = vector.broadcast %352 : f32 to vector<1x128xf32>
    %410 = arith.addf %400, %409 : vector<1x128xf32>
    %411 = tpu.concatenate %271, %273, %402, %404, %406, %408, %410, %400 in 0 : vector<1x128xf32>, vector<1x128xf32>, vector<1x128xf32>, vector<1x128xf32>, vector<1x128xf32>, vector<1x128xf32>, vector<1x128xf32>, vector<1x128xf32> -> vector<8x128xf32>
    %c0_150 = arith.constant 0 : index
    %c0_151 = arith.constant 0 : index
    %412 = vector.load %arg7[%c0_150, %c0_151] : memref<8x128xf32, #tpu.memory_space<vmem>>, vector<8x128xf32>
    tpu.vector_store %arg7[%c0_150, %c0_151], %411 {strides = array<i32>} : memref<8x128xf32, #tpu.memory_space<vmem>>, vector<8x128xf32>,
    return
  }
  func.func @transform_0(%arg0: i32) -> (i32, i32, i32) {
    %c0_i32 = arith.constant 0 : i32
    %c0_i32_0 = arith.constant 0 : i32
    %c0_i32_1 = arith.constant 0 : i32
    return %c0_i32, %arg0, %c0_i32_0 : i32, i32, i32
  }
  func.func @transform_1(%arg0: i32) -> (i32, i32) {
    %c0_i32 = arith.constant 0 : i32
    %c0_i32_0 = arith.constant 0 : i32
    return %arg0, %c0_i32 : i32, i32
  }
  func.func @transform_2(%arg0: i32) -> (i32, i32) {
    %c0_i32 = arith.constant 0 : i32
    %c0_i32_0 = arith.constant 0 : i32
    return %arg0, %c0_i32 : i32, i32
  }
  func.func @transform_3(%arg0: i32) -> (i32, i32) {
    %c0_i32 = arith.constant 0 : i32
    %c0_i32_0 = arith.constant 0 : i32
    return %arg0, %c0_i32 : i32, i32
  }
  func.func @transform_4(%arg0: i32) -> (i32, i32, i32) {
    %c0_i32 = arith.constant 0 : i32
    %c0_i32_0 = arith.constant 0 : i32
    %c0_i32_1 = arith.constant 0 : i32
    %c0_i32_2 = arith.constant 0 : i32
    return %c0_i32, %c0_i32_0, %c0_i32_1 : i32, i32, i32
  }
  func.func @transform_5(%arg0: i32) -> (i32, i32) {
    %c0_i32 = arith.constant 0 : i32
    %c0_i32_0 = arith.constant 0 : i32
    %c0_i32_1 = arith.constant 0 : i32
    return %c0_i32, %c0_i32_0 : i32, i32
  }
  func.func @transform_6(%arg0: i32) -> (i32, i32) {
    %c0_i32 = arith.constant 0 : i32
    %c0_i32_0 = arith.constant 0 : i32
    return %arg0, %c0_i32 : i32, i32
  }
}

</mosaic_0001>

<llo_original>
// kernel: board_loss.2
$region0: #{board_loss.2}
  #allocation0 [shape = 'u32[]', space=smem, size = 0x4, offset = 0x4, fixed_abs, tag = 'smem constant byte address 0x4 - core index']
  #allocation1 [shape = 'u32[72,128]{1,0:T(1,128)}', space=vmem, size = 0x9000, scoped, tag = 'internal scratch']
  #allocation2 [shape = 'u32[2048]{0}', space=vmem, size = 0x2000, scoped, tag = 'scoped memory for board_loss.2']
  #allocation3 [shape = 'u32[2048]{0}', space=vmem, size = 0x2000, scoped, tag = 'scoped memory for board_loss.2']
  #allocation4 [shape = 'u32[2048]{0}', space=vmem, size = 0x2000, scoped, tag = 'scoped memory for board_loss.2']
  #allocation5 [shape = 'u32[2048]{0}', space=vmem, size = 0x2000, scoped, tag = 'scoped memory for board_loss.2']
  #allocation6 [shape = 'u32[2048]{0}', space=vmem, size = 0x2000, scoped, tag = 'scoped memory for board_loss.2']
  #allocation7 [shape = 'u32[2048]{0}', space=vmem, size = 0x2000, scoped, tag = 'scoped memory for board_loss.2']
  #allocation8 [shape = 'u32[2048]{0}', space=vmem, size = 0x2000, scoped, tag = 'scoped memory for board_loss.2']
  #allocation9 [shape = 'u32[2048]{0}', space=vmem, size = 0x2000, scoped, tag = 'scoped memory for board_loss.2']
  #allocation10 [shape = 'u32[2048]{0}', space=vmem, size = 0x2000, scoped, tag = 'scoped memory for board_loss.2']
  #allocation11 [shape = 'u32[2048]{0}', space=vmem, size = 0x2000, scoped, tag = 'scoped memory for board_loss.2']
  #allocation12 [shape = 'u32[2048]{0}', space=vmem, size = 0x2000, scoped, tag = 'scoped memory for board_loss.2']
  #allocation13 [shape = 'u32[2048]{0}', space=vmem, size = 0x2000, scoped, tag = 'scoped memory for board_loss.2']
  #allocation14 [shape = 'u32[2048]{0}', space=vmem, size = 0x2000, scoped, tag = 'scoped memory for board_loss.2']
  #allocation15 [shape = 'u32[2048]{0}', space=vmem, size = 0x2000, scoped, tag = 'scoped memory for board_loss.2']
  #allocation16 [shape = 'u32[2048]{0}', space=vmem, size = 0x2000, scoped, tag = 'scoped memory for board_loss.2']
  #allocation17 [shape = 'u32[2048]{0}', space=vmem, size = 0x2000, scoped, tag = 'scoped memory for board_loss.2']
  #allocation18 [shape = 'u32[2048]{0}', space=vmem, size = 0x2000, scoped, tag = 'scoped memory for board_loss.2']
  #allocation19 [shape = 'u32[2048]{0}', space=vmem, size = 0x2000, scoped, tag = 'scoped memory for board_loss.2']
  #allocation20 [shape = 'u32[2048]{0}', space=vmem, size = 0x2000, scoped, tag = 'scoped memory for board_loss.2']
  #allocation21 [shape = 'u32[2048]{0}', space=vmem, size = 0x2000, scoped, tag = 'scoped memory for board_loss.2']
  #allocation22 [shape = 'u32[2048]{0}', space=vmem, size = 0x2000, scoped, tag = 'scoped memory for board_loss.2']
  #allocation23 [shape = 'u32[2048]{0}', space=vmem, size = 0x2000, scoped, tag = 'scoped memory for board_loss.2']
  #allocation24 [shape = 'u32[2048]{0}', space=vmem, size = 0x2000, scoped, tag = 'scoped memory for board_loss.2']
  #allocation25 [shape = 'u32[2048]{0}', space=vmem, size = 0x2000, scoped, tag = 'scoped memory for board_loss.2']
  #allocation26 [shape = 'u32[2048]{0}', space=vmem, size = 0x2000, scoped, tag = 'scoped memory for board_loss.2']
  #allocation27 [shape = 'u32[2048]{0}', space=vmem, size = 0x2000, scoped, tag = 'scoped memory for board_loss.2']
  #allocation28 [shape = 'u32[2048]{0}', space=vmem, size = 0x2000, scoped, tag = 'scoped memory for board_loss.2']
  #allocation29 [shape = 'u32[2048]{0}', space=vmem, size = 0x2000, scoped, tag = 'scoped memory for board_loss.2']
  #allocation30 [shape = 'u32[2048]{0}', space=vmem, size = 0x2000, scoped, tag = 'scoped memory for board_loss.2']
  #allocation31 [shape = 'u32[2048]{0}', space=vmem, size = 0x2000, scoped, tag = 'scoped memory for board_loss.2']
  %s0 = inlined_call_operand.vmem [shape: f32[13,16,128], index: 0, kind: input, shape index: {}]
  %s1 = inlined_call_operand.vmem [shape: s32[16,128], index: 1, kind: input, shape index: {}]
  %s2 = inlined_call_operand.vmem [shape: f32[24,72], index: 2, kind: input, shape index: {}]
  %s3 = inlined_call_operand.<no memory space> [shape: f32[], index: 3, kind: input, shape index: {}]
  %s4 = inlined_call_operand.vmem [shape: f32[24,72], index: 4, kind: input, shape index: {}]
  %s5 = inlined_call_operand.vmem [shape: f32[13,128], index: 5, kind: input, shape index: {}]
  %s6 = inlined_call_operand.vmem [shape: f32[58], index: 6, kind: input, shape index: {}]
  %s7 = inlined_call_operand.<no memory space> [shape: f32[], index: 7, kind: input, shape index: {}]
  %s8 = inlined_call_operand.vmem [shape: f32[65], index: 8, kind: input, shape index: {}]
  %s9 = inlined_call_operand.vmem [shape: f32[4], index: 9, kind: input, shape index: {}]
  %s10 = inlined_call_operand.<no memory space> [shape: f32[1], index: 10, kind: input, shape index: {}]
  %s11 = inlined_call_operand.vmem [shape: f32[16,128], index: 11, kind: output, shape index: {}]
  %s12 = sld [smem:[#allocation0]]
  $region103: #{board_loss.2} parent=0
    _
  %s14 = ssub.s32 1, %s12
  %s15 = scalar_select 0, %s14, %s12
  %v16 = vstv %s3
  %v17 = vstv %s3
  %v18 = vstv %s7
  %v19 = vstv %s7
  %v20 = vstv %s7
  %v21 = vstv %s10
  %v22 = vstv %s7
  $region1: #{board_loss.2} parent=0
    #allocation32 [shape = 'u8[106496]{0}', space=vmem, size = 0x1a000, scoped, tag = 'input window, operand 0']
    loop: start=0, step=1, limit=4
    $region2: #{board_loss.2} parent=1 // loop_pre_header
      _
    $region3: #{board_loss.2} parent=1 // loop_header
      %s24 = sphi 0, %s28
      %p25 = scmp.ge.s32.totalorder %s24, 4
      %s34 = sphi 0, %s36
      %s37 = sphi 0, %s34
      %s38 = sphi 0, %s37
      %s54 = sphi 0, %s38
      %s60 = sphi 0, %s62
      %s63 = sphi 0, %s60
      %s64 = sphi 0, %s63
      %s80 = sphi 0, %s64
      %s86 = sphi 0, %s88
      %s89 = sphi 0, %s86
      %s90 = sphi 0, %s89
      %s106 = sphi 0, %s90
      %s112 = sphi 0, %s114
      %s115 = sphi 0, %s112
      %s116 = sphi 0, %s115
      %s132 = sphi 0, %s116
      %s136 = sphi 0, %s136
      %s138 = sphi 0, %s136
      %s139 = sphi 0, %s138
      %s153 = sphi 0, %s139
      %s161 = sphi 0, %s163
      %s164 = sphi 0, %s161
      %s165 = sphi 0, %s164
      %s181 = sphi 0, %s165
      %s189 = sphi 0, %s191
      %s192 = sphi 0, %s189
      %s193 = sphi 0, %s192
      %s209 = sphi 0, %s193
      %s217 = sphi 0, %s219
      %s220 = sphi 0, %s217
      %s221 = sphi 0, %s220
      %s237 = sphi 0, %s221
      %s243 = sphi 0, %s245
      %s246 = sphi 0, %s243
      %s247 = sphi 0, %s246
      %s263 = sphi 0, %s247
    $region4: #{board_loss.2} parent=1 // loop_header_branch
      %27 = sbr.rel (%p25) target = $region8
    $region5: #{board_loss.2} parent=1 // loop_body
      %s29 = ssub.s32 %s24, 1
      %s30 = ssub.s32 %s24, 2
      %s31 = sadd.s32 %s24, 1
      %s32 = ssub.s32 %s24, %s31
      %p33 = scmp.eq.s32.totalorder %s32, 0
      %s35 = sadd.s32 %s34, 1
      %s36 = scalar_select %p33, %s34, %s35
      %p39 = pneg %p33
      %p40 = scmp.eq.s32.totalorder %s24, 1
      %p41 = por %p39, %p40
      %p42 = scmp.ne.s32.totalorder %s34, %s37
      %p43 = scmp.eq.s32.totalorder %s24, 0
      %p44 = por %p42, %p43
      %p45 = scmp.ne.s32.totalorder %s34, %s37
      %p46 = scmp.eq.s32.totalorder %s29, 1
      %p47 = por %p45, %p46
      %p48 = scmp.ne.s32.totalorder %s37, %s38
      %p49 = scmp.eq.s32.totalorder %s29, 0
      %p50 = por %p48, %p49
      %p51 = scmp.ne.s32.totalorder %s37, %s38
      %p52 = scmp.eq.s32.totalorder %s30, 1
      %p53 = por %p51, %p52
      %p55 = scmp.ne.s32.totalorder %s38, %s54
      %p56 = scmp.eq.s32.totalorder %s30, 0
      %p57 = por %p55, %p56
      %s58 = ssub.s32 %s24, %s31
      %p59 = scmp.eq.s32.totalorder %s58, 0
      %s61 = sadd.s32 %s60, 1
      %s62 = scalar_select %p59, %s60, %s61
      %p65 = pneg %p59
      %p66 = scmp.eq.s32.totalorder %s24, 1
      %p67 = por %p65, %p66
      %p68 = scmp.ne.s32.totalorder %s60, %s63
      %p69 = scmp.eq.s32.totalorder %s24, 0
      %p70 = por %p68, %p69
      %p71 = scmp.ne.s32.totalorder %s60, %s63
      %p72 = scmp.eq.s32.totalorder %s29, 1
      %p73 = por %p71, %p72
      %p74 = scmp.ne.s32.totalorder %s63, %s64
      %p75 = scmp.eq.s32.totalorder %s29, 0
      %p76 = por %p74, %p75
      %p77 = scmp.ne.s32.totalorder %s63, %s64
      %p78 = scmp.eq.s32.totalorder %s30, 1
      %p79 = por %p77, %p78
      %p81 = scmp.ne.s32.totalorder %s64, %s80
      %p82 = scmp.eq.s32.totalorder %s30, 0
      %p83 = por %p81, %p82
      %s84 = ssub.s32 %s24, %s31
      %p85 = scmp.eq.s32.totalorder %s84, 0
      %s87 = sadd.s32 %s86, 1
      %s88 = scalar_select %p85, %s86, %s87
      %p91 = pneg %p85
      %p92 = scmp.eq.s32.totalorder %s24, 1
      %p93 = por %p91, %p92
      %p94 = scmp.ne.s32.totalorder %s86, %s89
      %p95 = scmp.eq.s32.totalorder %s24, 0
      %p96 = por %p94, %p95
      %p97 = scmp.ne.s32.totalorder %s86, %s89
      %p98 = scmp.eq.s32.totalorder %s29, 1
      %p99 = por %p97, %p98
      %p100 = scmp.ne.s32.totalorder %s89, %s90
      %p101 = scmp.eq.s32.totalorder %s29, 0
      %p102 = por %p100, %p101
      %p103 = scmp.ne.s32.totalorder %s89, %s90
      %p104 = scmp.eq.s32.totalorder %s30, 1
      %p105 = por %p103, %p104
      %p107 = scmp.ne.s32.totalorder %s90, %s106
      %p108 = scmp.eq.s32.totalorder %s30, 0
      %p109 = por %p107, %p108
      %s110 = ssub.s32 %s24, %s31
      %p111 = scmp.eq.s32.totalorder %s110, 0
      %s113 = sadd.s32 %s112, 1
      %s114 = scalar_select %p111, %s112, %s113
      %p117 = pneg %p111
      %p118 = scmp.eq.s32.totalorder %s24, 1
      %p119 = por %p117, %p118
      %p120 = scmp.ne.s32.totalorder %s112, %s115
      %p121 = scmp.eq.s32.totalorder %s24, 0
      %p122 = por %p120, %p121
      %p123 = scmp.ne.s32.totalorder %s112, %s115
      %p124 = scmp.eq.s32.totalorder %s29, 1
      %p125 = por %p123, %p124
      %p126 = scmp.ne.s32.totalorder %s115, %s116
      %p127 = scmp.eq.s32.totalorder %s29, 0
      %p128 = por %p126, %p127
      %p129 = scmp.ne.s32.totalorder %s115, %s116
      %p130 = scmp.eq.s32.totalorder %s30, 1
      %p131 = por %p129, %p130
      %p133 = scmp.ne.s32.totalorder %s116, %s132
      %p134 = scmp.eq.s32.totalorder %s30, 0
      %p135 = por %p133, %p134
      %s137 = sadd.s32 %s136, 1
      %p140 = scmp.eq.s32.totalorder %s24, 1
      %p141 = scmp.ne.s32.totalorder %s136, %s138
      %p142 = scmp.eq.s32.totalorder %s24, 0
      %p143 = por %p141, %p142
      %p144 = scmp.ne.s32.totalorder %s136, %s138
      %p145 = scmp.eq.s32.totalorder %s29, 1
      %p146 = por %p144, %p145
      %p147 = scmp.ne.s32.totalorder %s138, %s139
      %p148 = scmp.eq.s32.totalorder %s29, 0
      %p149 = por %p147, %p148
      %p150 = scmp.ne.s32.totalorder %s138, %s139
      %p151 = scmp.eq.s32.totalorder %s30, 1
      %p152 = por %p150, %p151
      %p154 = scmp.ne.s32.totalorder %s139, %s153
      %p155 = scmp.eq.s32.totalorder %s30, 0
      %p156 = por %p154, %p155
      %s159 = ssub.s32 0, 0
      %p160 = scmp.eq.s32.totalorder %s159, 0
      %s162 = sadd.s32 %s161, 1
      %s163 = scalar_select %p160, %s161, %s162
      %p166 = pneg %p160
      %p167 = scmp.eq.s32.totalorder %s24, 1
      %p168 = por %p166, %p167
      %p169 = scmp.ne.s32.totalorder %s161, %s164
      %p170 = scmp.eq.s32.totalorder %s24, 0
      %p171 = por %p169, %p170
      %p172 = scmp.ne.s32.totalorder %s161, %s164
      %p173 = scmp.eq.s32.totalorder %s29, 1
      %p174 = por %p172, %p173
      %p175 = scmp.ne.s32.totalorder %s164, %s165
      %p176 = scmp.eq.s32.totalorder %s29, 0
      %p177 = por %p175, %p176
      %p178 = scmp.ne.s32.totalorder %s164, %s165
      %p179 = scmp.eq.s32.totalorder %s30, 1
      %p180 = por %p178, %p179
      %p182 = scmp.ne.s32.totalorder %s165, %s181
      %p183 = scmp.eq.s32.totalorder %s30, 0
      %p184 = por %p182, %p183
      %s187 = ssub.s32 0, 0
      %p188 = scmp.eq.s32.totalorder %s187, 0
      %s190 = sadd.s32 %s189, 1
      %s191 = scalar_select %p188, %s189, %s190
      %p194 = pneg %p188
      %p195 = scmp.eq.s32.totalorder %s24, 1
      %p196 = por %p194, %p195
      %p197 = scmp.ne.s32.totalorder %s189, %s192
      %p198 = scmp.eq.s32.totalorder %s24, 0
      %p199 = por %p197, %p198
      %p200 = scmp.ne.s32.totalorder %s189, %s192
      %p201 = scmp.eq.s32.totalorder %s29, 1
      %p202 = por %p200, %p201
      %p203 = scmp.ne.s32.totalorder %s192, %s193
      %p204 = scmp.eq.s32.totalorder %s29, 0
      %p205 = por %p203, %p204
      %p206 = scmp.ne.s32.totalorder %s192, %s193
      %p207 = scmp.eq.s32.totalorder %s30, 1
      %p208 = por %p206, %p207
      %p210 = scmp.ne.s32.totalorder %s193, %s209
      %p211 = scmp.eq.s32.totalorder %s30, 0
      %p212 = por %p210, %p211
      %s215 = ssub.s32 0, 0
      %p216 = scmp.eq.s32.totalorder %s215, 0
      %s218 = sadd.s32 %s217, 1
      %s219 = scalar_select %p216, %s217, %s218
      %p222 = pneg %p216
      %p223 = scmp.eq.s32.totalorder %s24, 1
      %p224 = por %p222, %p223
      %p225 = scmp.ne.s32.totalorder %s217, %s220
      %p226 = scmp.eq.s32.totalorder %s24, 0
      %p227 = por %p225, %p226
      %p228 = scmp.ne.s32.totalorder %s217, %s220
      %p229 = scmp.eq.s32.totalorder %s29, 1
      %p230 = por %p228, %p229
      %p231 = scmp.ne.s32.totalorder %s220, %s221
      %p232 = scmp.eq.s32.totalorder %s29, 0
      %p233 = por %p231, %p232
      %p234 = scmp.ne.s32.totalorder %s220, %s221
      %p235 = scmp.eq.s32.totalorder %s30, 1
      %p236 = por %p234, %p235
      %p238 = scmp.ne.s32.totalorder %s221, %s237
      %p239 = scmp.eq.s32.totalorder %s30, 0
      %p240 = por %p238, %p239
      %s241 = ssub.s32 %s24, %s31
      %p242 = scmp.eq.s32.totalorder %s241, 0
      %s244 = sadd.s32 %s243, 1
      %s245 = scalar_select %p242, %s243, %s244
      %p248 = pneg %p242
      %p249 = scmp.eq.s32.totalorder %s24, 1
      %p250 = por %p248, %p249
      %p251 = scmp.ne.s32.totalorder %s243, %s246
      %p252 = scmp.eq.s32.totalorder %s24, 0
      %p253 = por %p251, %p252
      %p254 = scmp.ne.s32.totalorder %s243, %s246
      %p255 = scmp.eq.s32.totalorder %s29, 1
      %p256 = por %p254, %p255
      %p257 = scmp.ne.s32.totalorder %s246, %s247
      %p258 = scmp.eq.s32.totalorder %s29, 0
      %p259 = por %p257, %p258
      %p260 = scmp.ne.s32.totalorder %s246, %s247
      %p261 = scmp.eq.s32.totalorder %s30, 1
      %p262 = por %p260, %p261
      %p264 = scmp.ne.s32.totalorder %s247, %s263
      %p265 = scmp.eq.s32.totalorder %s30, 0
      %p266 = por %p264, %p265
      %p267 = scmp.le.s32.totalorder 1, %s24
      %p268 = scmp.lt.s32.totalorder %s24, 3
      %p269 = pnand %p267, %p268
      %p270 = pneg %p269
      // Predicated region
      $region9: #{board_loss.2} parent=5 // pred_check
        _
      $region10: #{board_loss.2} parent=5 // pred_check_branch
        %272 = sbr.rel (%p269) target = $region12
      $region11: #{board_loss.2} parent=5 // pred_region
        %s273 = ssub.s32 %s24, 1
        // Predicated region
        $region13: #{board_loss.2} parent=11 // pred_check
          %p274 = pneg %p149
        $region14: #{board_loss.2} parent=11 // pred_check_branch
          %276 = sbr.rel (%p274) target = $region16
        $region15: #{board_loss.2} parent=11 // pred_region
          _
        $region16: #{board_loss.2} parent=11 // pred_fallthru
          _
        // Predicated region
        $region17: #{board_loss.2} parent=11 // pred_check
          %p277 = pneg %p177
        $region18: #{board_loss.2} parent=11 // pred_check_branch
          %279 = sbr.rel (%p277) target = $region20
        $region19: #{board_loss.2} parent=11 // pred_region
          %s281 = ssub.s32 1, 0
          %p282 = scmp.lt.s32.totalorder 0, 0
          %s283 = scalar_select %p282, 0, 0
          %s284 = scalar_lea.vmem %s6, %s283
          %s286 = ssub.s32 1, 0
        $region20: #{board_loss.2} parent=11 // pred_fallthru
          _
        // Predicated region
        $region21: #{board_loss.2} parent=11 // pred_check
          %p287 = pneg %p205
        $region22: #{board_loss.2} parent=11 // pred_check_branch
          %289 = sbr.rel (%p287) target = $region24
        $region23: #{board_loss.2} parent=11 // pred_region
          %s291 = ssub.s32 1, 0
          %p292 = scmp.lt.s32.totalorder 0, 0
          %s293 = scalar_select %p292, 0, 0
          %s294 = scalar_lea.vmem %s8, %s293
          %s296 = ssub.s32 1, 0
        $region24: #{board_loss.2} parent=11 // pred_fallthru
          _
        // Predicated region
        $region25: #{board_loss.2} parent=11 // pred_check
          %p297 = pneg %p233
        $region26: #{board_loss.2} parent=11 // pred_check_branch
          %299 = sbr.rel (%p297) target = $region28
        $region27: #{board_loss.2} parent=11 // pred_region
          %s301 = ssub.s32 1, 0
          %p302 = scmp.lt.s32.totalorder 0, 0
          %s303 = scalar_select %p302, 0, 0
          %s304 = scalar_lea.vmem %s9, %s303
          %s306 = ssub.s32 1, 0
        $region28: #{board_loss.2} parent=11 // pred_fallthru
          _
      $region12: #{board_loss.2} parent=5 // pred_fallthru
        _
      %p307 = scmp.lt.s32.totalorder %s24, 2
      // Predicated region
      $region29: #{board_loss.2} parent=5 // pred_check
        %p308 = pneg %p307
      $region30: #{board_loss.2} parent=5 // pred_check_branch
        %310 = sbr.rel (%p308) target = $region32
      $region31: #{board_loss.2} parent=5 // pred_region
        // Predicated region
        $region33: #{board_loss.2} parent=31 // pred_check
          %p311 = pneg %p44
        $region34: #{board_loss.2} parent=31 // pred_check_branch
          %313 = sbr.rel (%p311) target = $region36
        $region35: #{board_loss.2} parent=31 // pred_region
          %s314 = sand.u32 %s34, 1
          %s315 = sand.u32 %s34, 1
          %s316 = smul.addr %s315, 104
          %s317 = scalar_lea.vmem [#allocation32], %s316
          %s318 = smul.addr %s24, 8
          %s319 = scalar_lea.vmem %s0, %s318
          // Predicated region
          $region37: #{board_loss.2} parent=35 // pred_check
            _
          $region38: #{board_loss.2} parent=35 // pred_check_branch
            %321 = sbr.rel (0) target = $region40
          $region39: #{board_loss.2} parent=35 // pred_region
            // Predicated region
            $region41: #{board_loss.2} parent=39 // pred_check
              _
            $region42: #{board_loss.2} parent=39 // pred_check_branch
              %323 = sbr.rel (0) target = $region44
            $region43: #{board_loss.2} parent=39 // pred_region
              // Predicated region
              $region56: #{board_loss.2} parent=43 // pred_check
                _
              $region57: #{board_loss.2} parent=43 // pred_check_branch
                %363 = sbr.rel (0) target = $region59
              $region58: #{board_loss.2} parent=43 // pred_region
                loop: start=0, step=1, limit=1
                $region60: #{board_loss.2} parent=58 // loop_pre_header
                  _
                $region61: #{board_loss.2} parent=58 // loop_header
                  %s365 = sphi 0, %s369
                  %p366 = scmp.ge.s32.totalorder %s365, 1
                  %s370 = sphi %s319, %s319
                  %s371 = sphi %s317, %s317
                $region62: #{board_loss.2} parent=58 // loop_header_branch
                  %368 = sbr.rel (%p366) target = $region66
                $region63: #{board_loss.2} parent=58 // loop_body
                  %v372 = vld [vmem:[%s370] sm:$0xff]
                  %373 = vst [vmem:[%s371] sm:$0xff] %v372
                  %v374 = vld [vmem:[%s370 + $0x10] sm:$0xff]
                  %375 = vst [vmem:[%s371 + $0x8] sm:$0xff] %v374
                  %v376 = vld [vmem:[%s370 + $0x20] sm:$0xff]
                  %377 = vst [vmem:[%s371 + $0x10] sm:$0xff] %v376
                  %v378 = vld [vmem:[%s370 + $0x30] sm:$0xff]
                  %379 = vst [vmem:[%s371 + $0x18] sm:$0xff] %v378
                  %v380 = vld [vmem:[%s370 + $0x40] sm:$0xff]
                  %381 = vst [vmem:[%s371 + $0x20] sm:$0xff] %v380
                  %v382 = vld [vmem:[%s370 + $0x50] sm:$0xff]
                  %383 = vst [vmem:[%s371 + $0x28] sm:$0xff] %v382
                  %v384 = vld [vmem:[%s370 + $0x60] sm:$0xff]
                  %385 = vst [vmem:[%s371 + $0x30] sm:$0xff] %v384
                  %v386 = vld [vmem:[%s370 + $0x70] sm:$0xff]
                  %387 = vst [vmem:[%s371 + $0x38] sm:$0xff] %v386
                  %v388 = vld [vmem:[%s370 + $0x80] sm:$0xff]
                  %389 = vst [vmem:[%s371 + $0x40] sm:$0xff] %v388
                  %v390 = vld [vmem:[%s370 + $0x90] sm:$0xff]
                  %391 = vst [vmem:[%s371 + $0x48] sm:$0xff] %v390
                  %v392 = vld [vmem:[%s370 + $0xa0] sm:$0xff]
                  %393 = vst [vmem:[%s371 + $0x50] sm:$0xff] %v392
                  %v394 = vld [vmem:[%s370 + $0xb0] sm:$0xff]
                  %395 = vst [vmem:[%s371 + $0x58] sm:$0xff] %v394
                  %v396 = vld [vmem:[%s370 + $0xc0] sm:$0xff]
                  %397 = vst [vmem:[%s371 + $0x60] sm:$0xff] %v396
                $region64: #{board_loss.2} parent=58 // loop_footer
                  %s369 = sadd.s32 1, %s365
                $region65: #{board_loss.2} parent=58 // loop_footer_branch
                  %364 = sbr.rel target = $region61
                $region66: #{board_loss.2} parent=58 // loop_exit
                  _
              $region59: #{board_loss.2} parent=43 // pred_fallthru
                _
              // Predicated region
              $region67: #{board_loss.2} parent=43 // pred_check
                _
              $region68: #{board_loss.2} parent=43 // pred_check_branch
                %399 = sbr.rel target = $region70
              $region69: #{board_loss.2} parent=43 // pred_region
                _
              $region70: #{board_loss.2} parent=43 // pred_fallthru
                _
            $region44: #{board_loss.2} parent=39 // pred_fallthru
              _
            // Predicated region
            $region45: #{board_loss.2} parent=39 // pred_check
              _
            $region46: #{board_loss.2} parent=39 // pred_check_branch
              %325 = sbr.rel target = $region48
            $region47: #{board_loss.2} parent=39 // pred_region
              %s327 = ssub.s32 256, 1
              loop: start=0, step=1, limit=1
              $region49: #{board_loss.2} parent=47 // loop_pre_header
                _
              $region50: #{board_loss.2} parent=47 // loop_header
                %s329 = sphi 0, %s333
                %p330 = scmp.ge.s32.totalorder %s329, 1
                %s334 = sphi %s319, %s319
                %s335 = sphi %s317, %s317
              $region51: #{board_loss.2} parent=47 // loop_header_branch
                %332 = sbr.rel (%p330) target = $region55
              $region52: #{board_loss.2} parent=47 // loop_body
                %v336 = vld [vmem:[%s334] sm:%s327]
                %337 = vst [vmem:[%s335] sm:%s327] %v336
                %v338 = vld [vmem:[%s334 + $0x10] sm:%s327]
                %339 = vst [vmem:[%s335 + $0x8] sm:%s327] %v338
                %v340 = vld [vmem:[%s334 + $0x20] sm:%s327]
                %341 = vst [vmem:[%s335 + $0x10] sm:%s327] %v340
                %v342 = vld [vmem:[%s334 + $0x30] sm:%s327]
                %343 = vst [vmem:[%s335 + $0x18] sm:%s327] %v342
                %v344 = vld [vmem:[%s334 + $0x40] sm:%s327]
                %345 = vst [vmem:[%s335 + $0x20] sm:%s327] %v344
                %v346 = vld [vmem:[%s334 + $0x50] sm:%s327]
                %347 = vst [vmem:[%s335 + $0x28] sm:%s327] %v346
                %v348 = vld [vmem:[%s334 + $0x60] sm:%s327]
                %349 = vst [vmem:[%s335 + $0x30] sm:%s327] %v348
                %v350 = vld [vmem:[%s334 + $0x70] sm:%s327]
                %351 = vst [vmem:[%s335 + $0x38] sm:%s327] %v350
                %v352 = vld [vmem:[%s334 + $0x80] sm:%s327]
                %353 = vst [vmem:[%s335 + $0x40] sm:%s327] %v352
                %v354 = vld [vmem:[%s334 + $0x90] sm:%s327]
                %355 = vst [vmem:[%s335 + $0x48] sm:%s327] %v354
                %v356 = vld [vmem:[%s334 + $0xa0] sm:%s327]
                %357 = vst [vmem:[%s335 + $0x50] sm:%s327] %v356
                %v358 = vld [vmem:[%s334 + $0xb0] sm:%s327]
                %359 = vst [vmem:[%s335 + $0x58] sm:%s327] %v358
                %v360 = vld [vmem:[%s334 + $0xc0] sm:%s327]
                %361 = vst [vmem:[%s335 + $0x60] sm:%s327] %v360
              $region53: #{board_loss.2} parent=47 // loop_footer
                %s333 = sadd.s32 1, %s329
              $region54: #{board_loss.2} parent=47 // loop_footer_branch
                %328 = sbr.rel target = $region50
              $region55: #{board_loss.2} parent=47 // loop_exit
                _
            $region48: #{board_loss.2} parent=39 // pred_fallthru
              _
          $region40: #{board_loss.2} parent=35 // pred_fallthru
            _
          %400 = vnop
        $region36: #{board_loss.2} parent=31 // pred_fallthru
          _
        // Predicated region
        $region71: #{board_loss.2} parent=31 // pred_check
          %p401 = pneg %p70
        $region72: #{board_loss.2} parent=31 // pred_check_branch
          %403 = sbr.rel (%p401) target = $region74
        $region73: #{board_loss.2} parent=31 // pred_region
          %p404 = scmp.lt.s32.totalorder %s24, 1
          %s405 = scalar_select %p404, %s24, 1
          %s406 = smul.addr %s405, 8
          %s407 = scalar_lea.vmem %s1, %s406
        $region74: #{board_loss.2} parent=31 // pred_fallthru
          _
        // Predicated region
        $region75: #{board_loss.2} parent=31 // pred_check
          %p408 = pneg %p96
        $region76: #{board_loss.2} parent=31 // pred_check_branch
          %410 = sbr.rel (%p408) target = $region78
        $region77: #{board_loss.2} parent=31 // pred_region
          %s411 = smul.u32 2, %s24
          %s412 = ssub.s32 3, %s411
          %p413 = scmp.lt.s32.totalorder %s412, 2
          %s414 = scalar_select %p413, %s412, 2
          %s415 = smul.u32 8, %s414
          %p416 = scmp.lt.s32.totalorder %s411, 2
          %s417 = scalar_select %p416, %s411, 2
          %s418 = smul.addr %s417, 8
          %s419 = scalar_lea.vmem %s4, %s418
          %s420 = smul.u32 2, %s24
          %s421 = ssub.s32 3, %s420
          %p422 = scmp.lt.s32.totalorder %s421, 2
          %s423 = scalar_select %p422, %s421, 2
          %s424 = smul.u32 8, %s423
        $region78: #{board_loss.2} parent=31 // pred_fallthru
          _
        // Predicated region
        $region79: #{board_loss.2} parent=31 // pred_check
          %p425 = pneg %p122
        $region80: #{board_loss.2} parent=31 // pred_check_branch
          %427 = sbr.rel (%p425) target = $region82
        $region81: #{board_loss.2} parent=31 // pred_region
          %s428 = smul.u32 2, %s24
          %s429 = ssub.s32 3, %s428
          %p430 = scmp.lt.s32.totalorder %s429, 2
          %s431 = scalar_select %p430, %s429, 2
          %s432 = smul.u32 8, %s431
          %p433 = scmp.lt.s32.totalorder %s428, 2
          %s434 = scalar_select %p433, %s428, 2
          %s435 = smul.addr %s434, 8
          %s436 = scalar_lea.vmem %s2, %s435
          %s437 = smul.u32 2, %s24
          %s438 = ssub.s32 3, %s437
          %p439 = scmp.lt.s32.totalorder %s438, 2
          %s440 = scalar_select %p439, %s438, 2
          %s441 = smul.u32 8, %s440
        $region82: #{board_loss.2} parent=31 // pred_fallthru
          _
      $region32: #{board_loss.2} parent=5 // pred_fallthru
        _
      %p442 = scmp.le.s32.totalorder 1, %s24
      %p443 = scmp.lt.s32.totalorder %s24, 3
      %p444 = pnand %p442, %p443
      %p445 = pneg %p444
      // Predicated region
      $region83: #{board_loss.2} parent=5 // pred_check
        _
      $region84: #{board_loss.2} parent=5 // pred_check_branch
        %447 = sbr.rel (%p444) target = $region86
      $region85: #{board_loss.2} parent=5 // pred_region
        #allocation33 [shape = 'u8[8192]{0}', space=vmem, size = 0x2000, dematerialized = true, scoped, tag = 'FusionAdapter Buffer %fusion.2 = f32[32,128]{1,0:T(8,128)} fusion(%param_4.4, %param_3.5), kind=kLoop, calls=%fused_computation.3.clone, metadata={op_name="jit(board_loss)/jit(_pad)/pad" stack_frame_id=22}']
        #allocation34 [shape = 'u8[8192]{0}', space=vmem, size = 0x2000, dematerialized = true, scoped, tag = 'FusionAdapter Buffer %fusion.1 = f32[32,128]{1,0:T(8,128)} fusion(%param_2.6, %param_3.5), kind=kLoop, calls=%fused_computation.2.clone, metadata={op_name="jit(board_loss)/jit(_pad)/pad" stack_frame_id=26}']
        #allocation35 [shape = 'u8[6656]{0}', space=vmem, size = 0x1c00, dematerialized = true, scoped, tag = 'FusionAdapter Buffer %fusion.3 = f32[13,1,128]{2,1,0:T(1,128)} fusion(%param_5.4), kind=kLoop, calls=%fused_computation.6.clone, metadata={op_name="jit(board_loss)/reshape" stack_frame_id=28}']
        #allocation36 [shape = 'u8[512]{0}', space=vmem, size = 0x400, dematerialized = true, scoped, tag = 'FusionAdapter Buffer %maximum_bitcast_fusion.1 = f32[1,128]{1,0:T(1,128)} fusion(%param_6.4, %param_7.2, %param_8.2, %param_9.3, %param_10.2), kind=kLoop, calls=%fused_computation.7.clone.clone, metadata={op_name="jit(board_loss)/reshape" stack_frame_id=30}']
        %s448 = ssub.s32 %s24, 1
        %s449 = sand.u32 %s37, 1
        %s450 = sand.u32 %s37, 1
        %s451 = smul.addr %s450, 104
        %s452 = scalar_lea.vmem [#allocation32], %s451
        // Predicated region
        $region87: #{board_loss.2} parent=85 // pred_check
          %p453 = pneg %p50
        $region88: #{board_loss.2} parent=85 // pred_check_branch
          %455 = sbr.rel (%p453) target = $region90
        $region89: #{board_loss.2} parent=85 // pred_region
          _
        $region90: #{board_loss.2} parent=85 // pred_fallthru
          _
        %s456 = sand.u32 %s37, 1
        %s457 = sand.u32 %s37, 1
        %s458 = smul.addr %s457, 104
        %s459 = scalar_lea.vmem [#allocation32], %s458
        %p460 = pneg %p50
        %p461 = pneg %p47
        %p462 = scmp.lt.s32.totalorder %s29, 1
        %s463 = scalar_select %p462, %s29, 1
        %s464 = smul.addr %s463, 8
        %s465 = scalar_lea.vmem %s1, %s464
        %p466 = pneg %p76
        %p467 = pneg %p73
        %s468 = smul.u32 2, %s29
        %s469 = ssub.s32 3, %s468
        %p470 = scmp.lt.s32.totalorder %s469, 2
        %s471 = scalar_select %p470, %s469, 2
        %s472 = smul.u32 8, %s471
        %p473 = scmp.lt.s32.totalorder %s468, 2
        %s474 = scalar_select %p473, %s468, 2
        %s475 = smul.addr %s474, 8
        %s476 = scalar_lea.vmem %s4, %s475
        %p477 = pneg %p102
        %p478 = pneg %p99
        %s479 = smul.u32 2, %s29
        %s480 = ssub.s32 3, %s479
        %p481 = scmp.lt.s32.totalorder %s480, 2
        %s482 = scalar_select %p481, %s480, 2
        %s483 = smul.u32 8, %s482
        %p484 = scmp.lt.s32.totalorder %s479, 2
        %s485 = scalar_select %p484, %s479, 2
        %s486 = smul.addr %s485, 8
        %s487 = scalar_lea.vmem %s2, %s486
        %p488 = pneg %p128
        %p489 = pneg %p125
        %p490 = pneg %p149
        %p491 = pneg %p146
        %s493 = ssub.s32 1, 0
        %p494 = scmp.lt.s32.totalorder 0, 0
        %s495 = scalar_select %p494, 0, 0
        %s496 = scalar_lea.vmem %s6, %s495
        %p497 = pneg %p177
        %p498 = pneg %p174
        %s500 = ssub.s32 1, 0
        %p501 = scmp.lt.s32.totalorder 0, 0
        %s502 = scalar_select %p501, 0, 0
        %s503 = scalar_lea.vmem %s8, %s502
        %p504 = pneg %p205
        %p505 = pneg %p202
        %s507 = ssub.s32 1, 0
        %p508 = scmp.lt.s32.totalorder 0, 0
        %s509 = scalar_select %p508, 0, 0
        %s510 = scalar_lea.vmem %s9, %s509
        %p511 = pneg %p233
        %p512 = pneg %p230
        %p513 = pneg %p259
        %p514 = pneg %p256
        %p515 = scmp.lt.s32.totalorder %s29, 1
        %s516 = scalar_select %p515, %s29, 1
        %s517 = smul.addr %s516, 8
        %s518 = scalar_lea.vmem %s11, %s517
        %p519 = scmp.lt.s32.totalorder %s29, 1
        %s520 = scalar_select %p519, %s29, 1
        %s521 = smul.addr %s520, 8
        %s522 = scalar_lea.vmem %s1, %s521
        %s523 = smul.u32 2, %s29
        %s524 = ssub.s32 3, %s523
        %p525 = scmp.lt.s32.totalorder %s524, 2
        %s526 = scalar_select %p525, %s524, 2
        %s527 = smul.u32 8, %s526
        %p528 = scmp.lt.s32.totalorder %s523, 2
        %s529 = scalar_select %p528, %s523, 2
        %s530 = smul.addr %s529, 8
        %s531 = scalar_lea.vmem %s4, %s530
        %s532 = smul.u32 2, %s29
        %s533 = ssub.s32 3, %s532
        %p534 = scmp.lt.s32.totalorder %s533, 2
        %s535 = scalar_select %p534, %s533, 2
        %s536 = smul.u32 8, %s535
        %s537 = smul.u32 2, %s29
        %s538 = ssub.s32 3, %s537
        %p539 = scmp.lt.s32.totalorder %s538, 2
        %s540 = scalar_select %p539, %s538, 2
        %s541 = smul.u32 8, %s540
        %p542 = scmp.lt.s32.totalorder %s537, 2
        %s543 = scalar_select %p542, %s537, 2
        %s544 = smul.addr %s543, 8
        %s545 = scalar_lea.vmem %s2, %s544
        %s546 = smul.u32 2, %s29
        %s547 = ssub.s32 3, %s546
        %p548 = scmp.lt.s32.totalorder %s547, 2
        %s549 = scalar_select %p548, %s547, 2
        %s550 = smul.u32 8, %s549
        %s552 = ssub.s32 1, 0
        %p553 = scmp.lt.s32.totalorder 0, 0
        %s554 = scalar_select %p553, 0, 0
        %s555 = scalar_lea.vmem %s6, %s554
        %s557 = ssub.s32 1, 0
        %s559 = ssub.s32 1, 0
        %p560 = scmp.lt.s32.totalorder 0, 0
        %s561 = scalar_select %p560, 0, 0
        %s562 = scalar_lea.vmem %s8, %s561
        %s564 = ssub.s32 1, 0
        %s566 = ssub.s32 1, 0
        %p567 = scmp.lt.s32.totalorder 0, 0
        %s568 = scalar_select %p567, 0, 0
        %s569 = scalar_lea.vmem %s9, %s568
        %s571 = ssub.s32 1, 0
        %p572 = scmp.lt.s32.totalorder %s29, 1
        %s573 = scalar_select %p572, %s29, 1
        %s574 = smul.addr %s573, 8
        %s575 = scalar_lea.vmem %s11, %s574
        %v576 = vld [vmem:[%s531] sm:$0xff]
        %v577 = vlaneseq
        %v578 = vand.u32 %v577, 127
        %vm580 = vcmp.lt.s32.totalorder %v578, 72
        %v581 = vsel %vm580, %v576, %v16
        %s583 = ssub.s32 256, 1
        %584 = vst [vmem:[#allocation33] sm:%s583] %v581
        %s585 = scalar_lea.vmem %s531, 8
        %s586 = sadd.s32 %s532, 1
        %s587 = ssub.s32 2, %s586
        %p588 = scmp.lt.s32.totalorder %s587, 0
        %s589 = scalar_select %p588, 0, 255
        %v590 = vld [vmem:[%s585] sm:%s589]
        %s591 = sadd.s32 %s532, 1
        %s592 = ssub.s32 2, %s591
        %v593 = vstv %s592
        %vm594 = vcmp.lt.s32.totalorder %v593, 0
        %v595 = vsel %vm594, %v16, %v590
        %v596 = vlaneseq
        %v597 = vand.u32 %v596, 127
        %vm599 = vcmp.lt.s32.totalorder %v597, 72
        %v600 = vsel %vm599, %v595, %v16
        %s601 = scalar_lea.vmem [#allocation33], 8
        %s603 = ssub.s32 256, 1
        %604 = vst [vmem:[%s601] sm:%s603] %v600
        %v605 = vld [vmem:[%s545] sm:$0xff]
        %v606 = vlaneseq
        %v607 = vand.u32 %v606, 127
        %vm609 = vcmp.lt.s32.totalorder %v607, 72
        %v610 = vsel %vm609, %v605, %v17
        %s612 = ssub.s32 256, 1
        %613 = vst [vmem:[#allocation34] sm:%s612] %v610
        %s614 = scalar_lea.vmem %s545, 8
        %s615 = sadd.s32 %s546, 1
        %s616 = ssub.s32 2, %s615
        %p617 = scmp.lt.s32.totalorder %s616, 0
        %s618 = scalar_select %p617, 0, 255
        %v619 = vld [vmem:[%s614] sm:%s618]
        %s620 = sadd.s32 %s546, 1
        %s621 = ssub.s32 2, %s620
        %v622 = vstv %s621
        %vm623 = vcmp.lt.s32.totalorder %v622, 0
        %v624 = vsel %vm623, %v17, %v619
        %v625 = vlaneseq
        %v626 = vand.u32 %v625, 127
        %vm628 = vcmp.lt.s32.totalorder %v626, 72
        %v629 = vsel %vm628, %v624, %v17
        %s630 = scalar_lea.vmem [#allocation34], 8
        %s632 = ssub.s32 256, 1
        %633 = vst [vmem:[%s630] sm:%s632] %v629
        %v634 = vld [vmem:[%s5] ss:$0 sm:$0xff]
        %s636 = ssub.s32 2, 1
        %637 = vst [vmem:[#allocation35] sm:%s636] %v634
        %s638 = scalar_lea.vmem %s5, 1
        %v639 = vld [vmem:[%s638] ss:$0 sm:$0xff]
        %s640 = scalar_lea.vmem [#allocation35], 1
        %s642 = ssub.s32 2, 1
        %643 = vst [vmem:[%s640] sm:%s642] %v639
        %s644 = scalar_lea.vmem %s5, 2
        %v645 = vld [vmem:[%s644] ss:$0 sm:$0xff]
        %s646 = scalar_lea.vmem [#allocation35], 2
        %s648 = ssub.s32 2, 1
        %649 = vst [vmem:[%s646] sm:%s648] %v645
        %s650 = scalar_lea.vmem %s5, 3
        %v651 = vld [vmem:[%s650] ss:$0 sm:$0xff]
        %s652 = scalar_lea.vmem [#allocation35], 3
        %s654 = ssub.s32 2, 1
        %655 = vst [vmem:[%s652] sm:%s654] %v651
        %s656 = scalar_lea.vmem %s5, 4
        %v657 = vld [vmem:[%s656] ss:$0 sm:$0xff]
        %s658 = scalar_lea.vmem [#allocation35], 4
        %s660 = ssub.s32 2, 1
        %661 = vst [vmem:[%s658] sm:%s660] %v657
        %s662 = scalar_lea.vmem %s5, 5
        %v663 = vld [vmem:[%s662] ss:$0 sm:$0xff]
        %s664 = scalar_lea.vmem [#allocation35], 5
        %s666 = ssub.s32 2, 1
        %667 = vst [vmem:[%s664] sm:%s666] %v663
        %s668 = scalar_lea.vmem %s5, 6
        %v669 = vld [vmem:[%s668] ss:$0 sm:$0xff]
        %s670 = scalar_lea.vmem [#allocation35], 6
        %s672 = ssub.s32 2, 1
        %673 = vst [vmem:[%s670] sm:%s672] %v669
        %s674 = scalar_lea.vmem %s5, 7
        %v675 = vld [vmem:[%s674] ss:$0 sm:$0xff]
        %s676 = scalar_lea.vmem [#allocation35], 7
        %s678 = ssub.s32 2, 1
        %679 = vst [vmem:[%s676] sm:%s678] %v675
        %s680 = scalar_lea.vmem %s5, 8
        %v681 = vld [vmem:[%s680] ss:$0 sm:$0xff]
        %s682 = scalar_lea.vmem [#allocation35], 8
        %s684 = ssub.s32 2, 1
        %685 = vst [vmem:[%s682] sm:%s684] %v681
        %s686 = scalar_lea.vmem %s5, 8
        %s687 = scalar_lea.vmem %s686, 1
        %v688 = vld [vmem:[%s687] ss:$0 sm:$0xff]
        %s689 = scalar_lea.vmem [#allocation35], 9
        %s691 = ssub.s32 2, 1
        %692 = vst [vmem:[%s689] sm:%s691] %v688
        %s693 = scalar_lea.vmem %s5, 8
        %s694 = scalar_lea.vmem %s693, 2
        %v695 = vld [vmem:[%s694] ss:$0 sm:$0xff]
        %s696 = scalar_lea.vmem [#allocation35], 10
        %s698 = ssub.s32 2, 1
        %699 = vst [vmem:[%s696] sm:%s698] %v695
        %s700 = scalar_lea.vmem %s5, 8
        %s701 = scalar_lea.vmem %s700, 3
        %v702 = vld [vmem:[%s701] ss:$0 sm:$0xff]
        %s703 = scalar_lea.vmem [#allocation35], 11
        %s705 = ssub.s32 2, 1
        %706 = vst [vmem:[%s703] sm:%s705] %v702
        %s707 = scalar_lea.vmem %s5, 8
        %s708 = scalar_lea.vmem %s707, 4
        %v709 = vld [vmem:[%s708] ss:$0 sm:$0xff]
        %s710 = scalar_lea.vmem [#allocation35], 12
        %s712 = ssub.s32 2, 1
        %713 = vst [vmem:[%s710] sm:%s712] %v709
        %s714 = ssub.s32 0, 0
        %p715 = scmp.lt.s32.totalorder %s714, 0
        %s716 = scalar_select %p715, 0, 255
        %s717 = sand.u32 1, %s716
        %s718 = sand.u32 1, %s717
        %v719 = vld [vmem:[%s555] sm:%s718]
        %v720 = vlaneseq
        %v721 = vadd.s32 %v720, 1024
        %vm722 = vcmp.lt.s32.totalorder %v721, 1082
        %v723 = vsel %vm722, %v719, %v18
        %vm724 = vcmask 1046528
        %v725 = vsel %vm724, %v723, %v18
        %v726 = vrot.slane %v725, 7
        %v727 = vlaneseq
        %v728 = vand.u32 %v727, 127
        %vm729 = vcmp.lt.s32.totalorder %v728, 58
        %v730 = vsel %vm729, %v723, %v726
        %731 = vrot.lane.b32.xlu0 %v730, 70
        %v732 = vpop.permute.xlu0 %731
        %s733 = ssub.s32 0, 0
        %p734 = scmp.lt.s32.totalorder %s733, 0
        %s735 = scalar_select %p734, 0, 255
        %s736 = sand.u32 1, %s735
        %s737 = sand.u32 1, %s736
        %v738 = vld [vmem:[%s562] sm:%s737]
        %v739 = vlaneseq
        %v740 = vadd.s32 %v739, 1024
        %vm741 = vcmp.lt.s32.totalorder %v740, 1089
        %v742 = vsel %vm741, %v738, %v19
        %vm743 = vcmask 1046528
        %v744 = vsel %vm743, %v742, %v19
        %v745 = vrot.slane %v744, 7
        %v746 = vlaneseq
        %v747 = vand.u32 %v746, 127
        %vm748 = vcmp.lt.s32.totalorder %v747, 123
        %v749 = vsel %vm748, %v742, %v745
        %750 = vrot.lane.b32.xlu0 %v749, 5
        %v751 = vpop.permute.xlu0 %750
        %s752 = ssub.s32 0, 0
        %p753 = scmp.lt.s32.totalorder %s752, 0
        %s754 = scalar_select %p753, 0, 255
        %s755 = sand.u32 1, %s754
        %s756 = sand.u32 1, %s755
        %v757 = vld [vmem:[%s569] sm:%s756]
        %v758 = vlaneseq
        %v759 = vadd.s32 %v758, 1024
        %vm760 = vcmp.lt.s32.totalorder %v759, 1028
        %v761 = vsel %vm760, %v757, %v20
        %vm762 = vcmask 1046528
        %v763 = vsel %vm762, %v761, %v20
        %v764 = vrot.slane %v763, 7
        %v765 = vlaneseq
        %v766 = vand.u32 %v765, 127
        %vm767 = vcmp.lt.s32.totalorder %v766, 127
        %v768 = vsel %vm767, %v761, %v764
        %769 = vrot.lane.b32.xlu0 %v768, 1
        %v770 = vpop.permute.xlu0 %769
        %v771 = vlaneseq
        %vm773 = vcmp.lt.s32.totalorder %v771, 1
        %v774 = vsel %vm773, %v21, %v22
        %775 = xla_tuple %v774, %v770
        %776 = xla_tuple %775
        %v777 = vmax.f32 %v774, %v770
        %778 = xla_tuple %v777
        %779 = xla_tuple %v777, %v751
        %780 = xla_tuple %779
        %v781 = vmax.f32 %v777, %v751
        %782 = xla_tuple %v781
        %783 = xla_tuple %v781, %v732
        %784 = xla_tuple %783
        %v785 = vmax.f32 %v781, %v732
        %786 = xla_tuple %v785
        %s788 = ssub.s32 2, 1
        %789 = vst [vmem:[#allocation36] sm:%s788] %v785
        %s790 = smul.u32 %s29, 16
        %v791 = vlaneseq
        %v792 = vand.u32 %v791, 127
        %v793 = vlaneseq
        %v794 = vshrl.u32 %v793, 7
        %v795 = vmul.u32 %v794, 2
        %v796 = vstv %s790
        %v797 = vadd.s32 %v796, %v795
        %vm798 = vcmp.ge.s32.totalorder %v792, 64
        %v799 = vsel %vm798, 1, 0
        %v800 = vadd.s32 %v797, %v799
        %vm801 = vcmp.lt.s32.totalorder %v800, 24
        %v802 = vsel %vm801, 1, 0
        %v803 = vcvt.s32.f32 %v802
        %v804 = vld [vmem:[%s452] sm:$0xff]
        %s805 = scalar_lea.vmem %s452, 8 [#allocation32]
        %v806 = vld [vmem:[%s805] sm:$0xff]
        %v807 = vmax.f32 %v804, %v806
        %s808 = scalar_lea.vmem %s452, 16 [#allocation32]
        %v809 = vld [vmem:[%s808] sm:$0xff]
        %v810 = vmax.f32 %v807, %v809
        %s811 = scalar_lea.vmem %s452, 24 [#allocation32]
        %v812 = vld [vmem:[%s811] sm:$0xff]
        %v813 = vmax.f32 %v810, %v812
        %s814 = scalar_lea.vmem %s452, 32 [#allocation32]
        %v815 = vld [vmem:[%s814] sm:$0xff]
        %v816 = vmax.f32 %v813, %v815
        %s817 = scalar_lea.vmem %s452, 40 [#allocation32]
        %v818 = vld [vmem:[%s817] sm:$0xff]
        %v819 = vmax.f32 %v816, %v818
        %s820 = scalar_lea.vmem %s452, 48 [#allocation32]
        %v821 = vld [vmem:[%s820] sm:$0xff]
        %v822 = vmax.f32 %v819, %v821
        %s823 = scalar_lea.vmem %s452, 56 [#allocation32]
        %v824 = vld [vmem:[%s823] sm:$0xff]
        %v825 = vmax.f32 %v822, %v824
        %s826 = scalar_lea.vmem %s452, 64 [#allocation32]
        %v827 = vld [vmem:[%s826] sm:$0xff]
        %v828 = vmax.f32 %v825, %v827
        %s829 = scalar_lea.vmem %s452, 72 [#allocation32]
        %v830 = vld [vmem:[%s829] sm:$0xff]
        %v831 = vmax.f32 %v828, %v830
        %s832 = scalar_lea.vmem %s452, 80 [#allocation32]
        %v833 = vld [vmem:[%s832] sm:$0xff]
        %v834 = vmax.f32 %v831, %v833
        %s835 = scalar_lea.vmem %s452, 88 [#allocation32]
        %v836 = vld [vmem:[%s835] sm:$0xff]
        %v837 = vmax.f32 %v834, %v836
        %s838 = scalar_lea.vmem %s452, 96 [#allocation32]
        %v839 = vld [vmem:[%s838] sm:$0xff]
        %v840 = vmax.f32 %v837, %v839
        %v841 = vld [vmem:[%s522] sm:$0xff]
        %v842 = vsub.f32 %v804, %v840
        %v843 = vmul.f32 %v842, 1.442695
        %v844 = vpow.pop %v843
        %v845 = vadd.f32 %v844, 0.0
        %vm846 = vcmp.eq.s32.totalorder %v841, 0
        %v847 = vsel %vm846, 1, 0
        %v848 = vcvt.s32.f32 %v847
        %v849 = vmul.f32 %v848, %v804
        %v850 = vadd.f32 %v849, 0.0
        %v851 = vld [vmem:[#allocation35] sm:$0x1]
        %v853 = vperm.slane %v851, 0
        %v855 = vmul.f32 %v848, %v853
        %v856 = vadd.f32 %v855, 0.0
        %v857 = vsub.f32 %v806, %v840
        %v858 = vmul.f32 %v857, 1.442695
        %v859 = vpow.pop %v858
        %v860 = vadd.f32 %v845, %v859
        %vm861 = vcmp.eq.s32.totalorder %v841, 1
        %v862 = vsel %vm861, 1, 0
        %v863 = vcvt.s32.f32 %v862
        %v864 = vmul.f32 %v863, %v806
        %v865 = vadd.f32 %v850, %v864
        %s866 = scalar_lea.vmem [#allocation35], 1
        %v867 = vld [vmem:[%s866] sm:$0x1]
        %v869 = vperm.slane %v867, 0
        %v871 = vmul.f32 %v863, %v869
        %v872 = vadd.f32 %v856, %v871
        %v873 = vsub.f32 %v809, %v840
        %v874 = vmul.f32 %v873, 1.442695
        %v875 = vpow.pop %v874
        %v876 = vadd.f32 %v860, %v875
        %vm877 = vcmp.eq.s32.totalorder %v841, 2
        %v878 = vsel %vm877, 1, 0
        %v879 = vcvt.s32.f32 %v878
        %v880 = vmul.f32 %v879, %v809
        %v881 = vadd.f32 %v865, %v880
        %s882 = scalar_lea.vmem [#allocation35], 2
        %v883 = vld [vmem:[%s882] sm:$0x1]
        %v885 = vperm.slane %v883, 0
        %v887 = vmul.f32 %v879, %v885
        %v888 = vadd.f32 %v872, %v887
        %v889 = vsub.f32 %v812, %v840
        %v890 = vmul.f32 %v889, 1.442695
        %v891 = vpow.pop %v890
        %v892 = vadd.f32 %v876, %v891
        %vm893 = vcmp.eq.s32.totalorder %v841, 3
        %v894 = vsel %vm893, 1, 0
        %v895 = vcvt.s32.f32 %v894
        %v896 = vmul.f32 %v895, %v812
        %v897 = vadd.f32 %v881, %v896
        %s898 = scalar_lea.vmem [#allocation35], 3
        %v899 = vld [vmem:[%s898] sm:$0x1]
        %v901 = vperm.slane %v899, 0
        %v903 = vmul.f32 %v895, %v901
        %v904 = vadd.f32 %v888, %v903
        %v905 = vsub.f32 %v815, %v840
        %v906 = vmul.f32 %v905, 1.442695
        %v907 = vpow.pop %v906
        %v908 = vadd.f32 %v892, %v907
        %vm909 = vcmp.eq.s32.totalorder %v841, 4
        %v910 = vsel %vm909, 1, 0
        %v911 = vcvt.s32.f32 %v910
        %v912 = vmul.f32 %v911, %v815
        %v913 = vadd.f32 %v897, %v912
        %s914 = scalar_lea.vmem [#allocation35], 4
        %v915 = vld [vmem:[%s914] sm:$0x1]
        %v917 = vperm.slane %v915, 0
        %v919 = vmul.f32 %v911, %v917
        %v920 = vadd.f32 %v904, %v919
        %v921 = vsub.f32 %v818, %v840
        %v922 = vmul.f32 %v921, 1.442695
        %v923 = vpow.pop %v922
        %v924 = vadd.f32 %v908, %v923
        %vm925 = vcmp.eq.s32.totalorder %v841, 5
        %v926 = vsel %vm925, 1, 0
        %v927 = vcvt.s32.f32 %v926
        %v928 = vmul.f32 %v927, %v818
        %v929 = vadd.f32 %v913, %v928
        %s930 = scalar_lea.vmem [#allocation35], 5
        %v931 = vld [vmem:[%s930] sm:$0x1]
        %v933 = vperm.slane %v931, 0
        %v935 = vmul.f32 %v927, %v933
        %v936 = vadd.f32 %v920, %v935
        %v937 = vsub.f32 %v821, %v840
        %v938 = vmul.f32 %v937, 1.442695
        %v939 = vpow.pop %v938
        %v940 = vadd.f32 %v924, %v939
        %vm941 = vcmp.eq.s32.totalorder %v841, 6
        %v942 = vsel %vm941, 1, 0
        %v943 = vcvt.s32.f32 %v942
        %v944 = vmul.f32 %v943, %v821
        %v945 = vadd.f32 %v929, %v944
        %s946 = scalar_lea.vmem [#allocation35], 6
        %v947 = vld [vmem:[%s946] sm:$0x1]
        %v949 = vperm.slane %v947, 0
        %v951 = vmul.f32 %v943, %v949
        %v952 = vadd.f32 %v936, %v951
        %v953 = vsub.f32 %v824, %v840
        %v954 = vmul.f32 %v953, 1.442695
        %v955 = vpow.pop %v954
        %v956 = vadd.f32 %v940, %v955
        %vm957 = vcmp.eq.s32.totalorder %v841, 7
        %v958 = vsel %vm957, 1, 0
        %v959 = vcvt.s32.f32 %v958
        %v960 = vmul.f32 %v959, %v824
        %v961 = vadd.f32 %v945, %v960
        %s962 = scalar_lea.vmem [#allocation35], 7
        %v963 = vld [vmem:[%s962] sm:$0x1]
        %v965 = vperm.slane %v963, 0
        %v967 = vmul.f32 %v959, %v965
        %v968 = vadd.f32 %v952, %v967
        %v969 = vsub.f32 %v827, %v840
        %v970 = vmul.f32 %v969, 1.442695
        %v971 = vpow.pop %v970
        %v972 = vadd.f32 %v956, %v971
        %vm973 = vcmp.eq.s32.totalorder %v841, 8
        %v974 = vsel %vm973, 1, 0
        %v975 = vcvt.s32.f32 %v974
        %v976 = vmul.f32 %v975, %v827
        %v977 = vadd.f32 %v961, %v976
        %s978 = scalar_lea.vmem [#allocation35], 8
        %v979 = vld [vmem:[%s978] sm:$0x1]
        %v981 = vperm.slane %v979, 0
        %v983 = vmul.f32 %v975, %v981
        %v984 = vadd.f32 %v968, %v983
        %v985 = vsub.f32 %v830, %v840
        %v986 = vmul.f32 %v985, 1.442695
        %v987 = vpow.pop %v986
        %v988 = vadd.f32 %v972, %v987
        %vm989 = vcmp.eq.s32.totalorder %v841, 9
        %v990 = vsel %vm989, 1, 0
        %v991 = vcvt.s32.f32 %v990
        %v992 = vmul.f32 %v991, %v830
        %v993 = vadd.f32 %v977, %v992
        %s994 = scalar_lea.vmem [#allocation35], 9
        %v995 = vld [vmem:[%s994] sm:$0x1]
        %v997 = vperm.slane %v995, 0
        %v999 = vmul.f32 %v991, %v997
        %v1000 = vadd.f32 %v984, %v999
        %v1001 = vsub.f32 %v833, %v840
        %v1002 = vmul.f32 %v1001, 1.442695
        %v1003 = vpow.pop %v1002
        %v1004 = vadd.f32 %v988, %v1003
        %vm1005 = vcmp.eq.s32.totalorder %v841, 10
        %v1006 = vsel %vm1005, 1, 0
        %v1007 = vcvt.s32.f32 %v1006
        %v1008 = vmul.f32 %v1007, %v833
        %v1009 = vadd.f32 %v993, %v1008
        %s1010 = scalar_lea.vmem [#allocation35], 10
        %v1011 = vld [vmem:[%s1010] sm:$0x1]
        %v1013 = vperm.slane %v1011, 0
        %v1015 = vmul.f32 %v1007, %v1013
        %v1016 = vadd.f32 %v1000, %v1015
        %v1017 = vsub.f32 %v836, %v840
        %v1018 = vmul.f32 %v1017, 1.442695
        %v1019 = vpow.pop %v1018
        %v1020 = vadd.f32 %v1004, %v1019
        %vm1021 = vcmp.eq.s32.totalorder %v841, 11
        %v1022 = vsel %vm1021, 1, 0
        %v1023 = vcvt.s32.f32 %v1022
        %v1024 = vmul.f32 %v1023, %v836
        %v1025 = vadd.f32 %v1009, %v1024
        %s1026 = scalar_lea.vmem [#allocation35], 11
        %v1027 = vld [vmem:[%s1026] sm:$0x1]
        %v1029 = vperm.slane %v1027, 0
        %v1031 = vmul.f32 %v1023, %v1029
        %v1032 = vadd.f32 %v1016, %v1031
        %v1033 = vsub.f32 %v839, %v840
        %v1034 = vmul.f32 %v1033, 1.442695
        %v1035 = vpow.pop %v1034
        %v1036 = vadd.f32 %v1020, %v1035
        %vm1037 = vcmp.eq.s32.totalorder %v841, 12
        %v1038 = vsel %vm1037, 1, 0
        %v1039 = vcvt.s32.f32 %v1038
        %v1040 = vmul.f32 %v1039, %v839
        %v1041 = vadd.f32 %v1025, %v1040
        %s1042 = scalar_lea.vmem [#allocation35], 12
        %v1043 = vld [vmem:[%s1042] sm:$0x1]
        %v1045 = vperm.slane %v1043, 0
        %v1047 = vmul.f32 %v1039, %v1045
        %v1048 = vadd.f32 %v1032, %v1047
        %v1049 = vlog2.pop %v1036
        %v1050 = vmul.f32 %v1049, 0.6931472
        %v1051 = vadd.f32 %v1050, %v840
        %v1052 = vmul.f32 %v1048, %v803
        %v1053 = vsub.f32 %v1051, %v1041
        %v1054 = vmul.f32 %v1052, %v1053
        %v1055 = vrot.slane %v1054, 4
        %v1056 = vadd.f32 %v1054, %v1055
        %v1057 = vrot.slane %v1056, 2
        %v1058 = vadd.f32 %v1056, %v1057
        %v1059 = vrot.slane %v1058, 1
        %v1060 = vadd.f32 %v1058, %v1059
        %v1061 = vrot.slane %v1052, 4
        %v1062 = vadd.f32 %v1052, %v1061
        %v1063 = vrot.slane %v1062, 2
        %v1064 = vadd.f32 %v1062, %v1063
        %v1065 = vrot.slane %v1064, 1
        %v1066 = vadd.f32 %v1064, %v1065
        %v1067 = vld [vmem:[#allocation33] sm:$0xff]
        %v1068 = vld [vmem:[#allocation33 + $0x8] sm:$0xff]
        %v1069 = vld [vmem:[#allocation34] sm:$0xff]
        %v1070 = vld [vmem:[#allocation34 + $0x8] sm:$0xff]
        %v1071 = vld [vmem:[#allocation36] sm:$0x1]
        %v1072 = vadd.s32 %v794, 8
        %v1073 = vadd.s32 %v796, %v794
        %v1074 = vadd.s32 %v796, %v1072
        %vm1075 = vcmp.lt.s32.totalorder %v1073, 24
        %vm1076 = vcmp.lt.s32.totalorder %v1074, 24
        %v1077 = vsel %vm1075, 1, 0
        %v1078 = vsel %vm1076, 1, 0
        %v1079 = vcvt.s32.f32 %v1077
        %v1080 = vcvt.s32.f32 %v1078
        %vm1081 = vcmp.lt.s32.totalorder %v792, 1
        %vm1082 = vcmp.ge.s32.totalorder %v792, 1
        %vm1083 = vcmp.lt.s32.totalorder %v792, 5
        %vm1084 = vmand %vm1082, %vm1083
        %vm1085 = vcmp.ge.s32.totalorder %v792, 5
        %vm1086 = vcmp.lt.s32.totalorder %v792, 70
        %vm1087 = vmand %vm1085, %vm1086
        %vm1088 = vcmp.ge.s32.totalorder %v792, 70
        %vm1089 = vcmp.lt.s32.totalorder %v792, 72
        %vm1090 = vmand %vm1088, %vm1089
        %v1092 = vperm.slane %v1071, 0
        %v1094 = vmul.f32 %v1092, %v1069
        %v1095 = vmul.f32 %v1092, %v1070
        %v1096 = vsub.f32 0.0, %v1067
        %v1097 = vsub.f32 0.0, %v1068
        %v1098 = vmax.f32 %v1096, 0.0
        %v1099 = vmax.f32 %v1097, 0.0
        %v1100 = vand.u32 2147483647, %v1096
        %v1101 = vand.u32 2147483647, %v1097
        %v1102 = vsub.f32 0.0, %v1100
        %v1103 = vsub.f32 0.0, %v1101
        %v1104 = vmul.f32 %v1102, 1.442695
        %v1105 = vpow.pop %v1104
        %v1106 = vmul.f32 %v1103, 1.442695
        %v1107 = vpow.pop %v1106
        %v1108 = vadd.f32 %v1105, 1.0
        %v1109 = vadd.f32 %v1107, 1.0
        %v1110 = vlog2.pop %v1108
        %v1111 = vmul.f32 %v1110, 0.6931472
        %v1112 = vlog2.pop %v1109
        %v1113 = vmul.f32 %v1112, 0.6931472
        %v1114 = vadd.f32 %v1098, %v1111
        %v1115 = vadd.f32 %v1099, %v1113
        %v1116 = vmul.f32 %v1094, %v1114
        %v1117 = vmul.f32 %v1095, %v1115
        %v1118 = vsub.f32 1.0, %v1069
        %v1119 = vsub.f32 1.0, %v1070
        %v1120 = vmax.f32 %v1067, 0.0
        %v1121 = vmax.f32 %v1068, 0.0
        %v1122 = vand.u32 2147483647, %v1067
        %v1123 = vand.u32 2147483647, %v1068
        %v1124 = vsub.f32 0.0, %v1122
        %v1125 = vsub.f32 0.0, %v1123
        %v1126 = vmul.f32 %v1124, 1.442695
        %v1127 = vpow.pop %v1126
        %v1128 = vmul.f32 %v1125, 1.442695
        %v1129 = vpow.pop %v1128
        %v1130 = vadd.f32 %v1127, 1.0
        %v1131 = vadd.f32 %v1129, 1.0
        %v1132 = vlog2.pop %v1130
        %v1133 = vmul.f32 %v1132, 0.6931472
        %v1134 = vlog2.pop %v1131
        %v1135 = vmul.f32 %v1134, 0.6931472
        %v1136 = vadd.f32 %v1120, %v1133
        %v1137 = vadd.f32 %v1121, %v1135
        %v1138 = vmul.f32 %v1118, %v1136
        %v1139 = vmul.f32 %v1119, %v1137
        %v1140 = vadd.f32 %v1116, %v1138
        %v1141 = vadd.f32 %v1117, %v1139
        %v1142 = vmul.f32 %v1140, %v1079
        %v1143 = vmul.f32 %v1141, %v1080
        %v1144 = vsel %vm1081, %v1142, 0.0
        %v1145 = vsel %vm1081, %v1143, 0.0
        %v1146 = vadd.f32 %v1144, %v1145
        %1147 = vadd.xlane.f32.xlu0 %v1146
        %v1148 = vpop.xlane.xlu0 %1147
        %v1149 = vrot.slane %v1148, 4
        %v1150 = vadd.f32 %v1148, %v1149
        %v1151 = vrot.slane %v1150, 2
        %v1152 = vadd.f32 %v1150, %v1151
        %v1153 = vrot.slane %v1152, 1
        %v1154 = vadd.f32 %v1152, %v1153
        %s1155 = vtos %v1154
        %v1156 = vsel %vm1084, %v1142, 0.0
        %v1157 = vsel %vm1084, %v1143, 0.0
        %v1158 = vadd.f32 %v1156, %v1157
        %1159 = vadd.xlane.f32.xlu0 %v1158
        %v1160 = vpop.xlane.xlu0 %1159
        %v1161 = vrot.slane %v1160, 4
        %v1162 = vadd.f32 %v1160, %v1161
        %v1163 = vrot.slane %v1162, 2
        %v1164 = vadd.f32 %v1162, %v1163
        %v1165 = vrot.slane %v1164, 1
        %v1166 = vadd.f32 %v1164, %v1165
        %s1167 = vtos %v1166
        %v1168 = vsub.f32 %v1067, %v1069
        %v1169 = vsub.f32 %v1068, %v1070
        %v1170 = vand.u32 2147483647, %v1168
        %v1171 = vand.u32 2147483647, %v1169
        %v1172 = vmul.f32 %v1170, %v1079
        %v1173 = vmul.f32 %v1171, %v1080
        %v1174 = vsel %vm1090, %v1172, 0.0
        %v1175 = vsel %vm1090, %v1173, 0.0
        %v1176 = vadd.f32 %v1174, %v1175
        %1177 = vadd.xlane.f32.xlu0 %v1176
        %v1178 = vpop.xlane.xlu0 %1177
        %v1179 = vrot.slane %v1178, 4
        %v1180 = vadd.f32 %v1178, %v1179
        %v1181 = vrot.slane %v1180, 2
        %v1182 = vadd.f32 %v1180, %v1181
        %v1183 = vrot.slane %v1182, 1
        %v1184 = vadd.f32 %v1182, %v1183
        %s1185 = vtos %v1184
        %v1186 = vsel %vm1087, %v1067, -1e+30
        %v1187 = vsel %vm1087, %v1068, -1e+30
        %v1188 = vsel %vm1087, %v1069, -1e+30
        %v1189 = vsel %vm1087, %v1070, -1e+30
        %v1190 = vsel %vm1087, %v1092, 0.0
        %v1191 = vmul.f32 %v1190, %v1079
        %v1192 = vmul.f32 %v1190, %v1080
        %v1193 = vcvt.s32.f32 %v792
        %1194 = vmax.xlane.f32.xlu0 %v1188
        %v1195 = vpop.xlane.xlu0 %1194
        %1196 = vmax.xlane.f32.xlu0 %v1189
        %v1197 = vpop.xlane.xlu0 %1196
        %vm1198 = vcmp.ge.f32.partialorder %v1188, %v1195
        %vm1199 = vcmp.ge.f32.partialorder %v1189, %v1197
        %v1200 = vsel %vm1198, %v1193, 1e+09
        %v1201 = vsel %vm1199, %v1193, 1e+09
        %1202 = vmin.xlane.f32.xlu0 %v1200
        %v1203 = vpop.xlane.xlu0 %1202
        %1204 = vmin.xlane.f32.xlu0 %v1201
        %v1205 = vpop.xlane.xlu0 %1204
        %vm1206 = vcmp.eq.f32.partialorder %v1193, %v1203
        %vm1207 = vcmp.eq.f32.partialorder %v1193, %v1205
        %v1208 = vsel %vm1206, 1, 0
        %v1209 = vsel %vm1207, 1, 0
        %v1210 = vcvt.s32.f32 %v1208
        %v1211 = vcvt.s32.f32 %v1209
        %1212 = vmax.xlane.f32.xlu0 %v1186
        %v1213 = vpop.xlane.xlu0 %1212
        %1214 = vmax.xlane.f32.xlu0 %v1187
        %v1215 = vpop.xlane.xlu0 %1214
        %v1216 = vsub.f32 %v1186, %v1213
        %v1217 = vsub.f32 %v1187, %v1215
        %v1218 = vmul.f32 %v1216, 1.442695
        %v1219 = vpow.pop %v1218
        %v1220 = vmul.f32 %v1217, 1.442695
        %v1221 = vpow.pop %v1220
        %1222 = vadd.xlane.f32.xlu0 %v1219
        %v1223 = vpop.xlane.xlu0 %1222
        %1224 = vadd.xlane.f32.xlu0 %v1221
        %v1225 = vpop.xlane.xlu0 %1224
        %v1226 = vlog2.pop %v1223
        %v1227 = vmul.f32 %v1226, 0.6931472
        %v1228 = vlog2.pop %v1225
        %v1229 = vmul.f32 %v1228, 0.6931472
        %v1230 = vadd.f32 %v1227, %v1213
        %v1231 = vadd.f32 %v1229, %v1215
        %v1232 = vmul.f32 %v1210, %v1186
        %v1233 = vmul.f32 %v1211, %v1187
        %1234 = vadd.xlane.f32.xlu0 %v1232
        %v1235 = vpop.xlane.xlu0 %1234
        %1236 = vadd.xlane.f32.xlu0 %v1233
        %v1237 = vpop.xlane.xlu0 %1236
        %v1238 = vmul.f32 %v1210, %v1191
        %v1239 = vmul.f32 %v1211, %v1192
        %1240 = vadd.xlane.f32.xlu0 %v1238
        %v1241 = vpop.xlane.xlu0 %1240
        %1242 = vadd.xlane.f32.xlu0 %v1239
        %v1243 = vpop.xlane.xlu0 %1242
        %v1244 = vsub.f32 %v1230, %v1235
        %v1245 = vsub.f32 %v1231, %v1237
        %v1246 = vmul.f32 %v1241, %v1244
        %v1247 = vmul.f32 %v1243, %v1245
        %vm1248 = vcmask 7168
        %v1249 = vsel %vm1248, %v1246, 0.0
        %v1250 = vsel %vm1248, %v1247, 0.0
        %v1251 = vadd.f32 %v1249, %v1250
        %1252 = vadd.xlane.f32.xlu0 %v1251
        %v1253 = vpop.xlane.xlu0 %1252
        %v1254 = vrot.slane %v1253, 4
        %v1255 = vadd.f32 %v1253, %v1254
        %v1256 = vrot.slane %v1255, 2
        %v1257 = vadd.f32 %v1255, %v1256
        %v1258 = vrot.slane %v1257, 1
        %v1259 = vadd.f32 %v1257, %v1258
        %s1260 = vtos %v1259
        %v1261 = vsel %vm1248, %v1241, 0.0
        %v1262 = vsel %vm1248, %v1243, 0.0
        %v1263 = vadd.f32 %v1261, %v1262
        %1264 = vadd.xlane.f32.xlu0 %v1263
        %v1265 = vpop.xlane.xlu0 %1264
        %v1266 = vrot.slane %v1265, 4
        %v1267 = vadd.f32 %v1265, %v1266
        %v1268 = vrot.slane %v1267, 2
        %v1269 = vadd.f32 %v1267, %v1268
        %v1270 = vrot.slane %v1269, 1
        %v1271 = vadd.f32 %v1269, %v1270
        %s1272 = vtos %v1271
        %v1273 = vstv %s1155
        %v1274 = vadd.f32 %v1273, 0.0
        %v1275 = vstv %s1167
        %v1276 = vadd.f32 %v1275, 0.0
        %v1277 = vstv %s1260
        %v1278 = vadd.f32 %v1277, 0.0
        %v1279 = vstv %s1272
        %v1280 = vadd.f32 %v1279, 0.0
        %v1281 = vstv %s1185
        %v1282 = vadd.f32 %v1281, 0.0
        %vm1283 = vcmask 1040384
        %v1284 = vsel %vm1283, %v1060, %v1066
        %vm1285 = vcmask 1041408
        %v1286 = vsel %vm1285, %v1284, %v1274
        %vm1287 = vcmask 1042432
        %v1288 = vsel %vm1287, %v1286, %v1276
        %vm1289 = vcmask 1043456
        %v1290 = vsel %vm1289, %v1288, %v1278
        %vm1291 = vcmask 1044480
        %v1292 = vsel %vm1291, %v1290, %v1280
        %vm1293 = vcmask 1045504
        %v1294 = vsel %vm1293, %v1292, %v1282
        %vm1295 = vcmask 1046528
        %v1296 = vsel %vm1295, %v1294, 0.0
        %1297 = vst [vmem:[%s575] sm:$0xff] %v1296
        %p1298 = scmp.lt.s32.totalorder %s29, 1
        %s1299 = scalar_select %p1298, %s29, 1
        %s1300 = smul.addr %s1299, 8
        %s1301 = scalar_lea.vmem %s11, %s1300
        // Predicated region
        $region91: #{board_loss.2} parent=85 // pred_check
          %p1302 = pneg %p256
        $region92: #{board_loss.2} parent=85 // pred_check_branch
          %1304 = sbr.rel (%p1302) target = $region94
        $region93: #{board_loss.2} parent=85 // pred_region
          _
        $region94: #{board_loss.2} parent=85 // pred_fallthru
          _
      $region86: #{board_loss.2} parent=5 // pred_fallthru
        _
      %p1305 = scmp.le.s32.totalorder 2, %s24
      // Predicated region
      $region95: #{board_loss.2} parent=5 // pred_check
        %p1306 = pneg %p1305
      $region96: #{board_loss.2} parent=5 // pred_check_branch
        %1308 = sbr.rel (%p1306) target = $region98
      $region97: #{board_loss.2} parent=5 // pred_region
        %s1309 = ssub.s32 %s24, 2
        // Predicated region
        $region99: #{board_loss.2} parent=97 // pred_check
          %p1310 = pneg %p262
        $region100: #{board_loss.2} parent=97 // pred_check_branch
          %1312 = sbr.rel (%p1310) target = $region102
        $region101: #{board_loss.2} parent=97 // pred_region
          %p1313 = scmp.lt.s32.totalorder %s30, 1
          %s1314 = scalar_select %p1313, %s30, 1
          %s1315 = smul.addr %s1314, 8
          %s1316 = scalar_lea.vmem %s11, %s1315
        $region102: #{board_loss.2} parent=97 // pred_fallthru
          _
      $region98: #{board_loss.2} parent=5 // pred_fallthru
        _
    $region6: #{board_loss.2} parent=1 // loop_footer
      %s28 = sadd.s32 1, %s24
    $region7: #{board_loss.2} parent=1 // loop_footer_branch
      %23 = sbr.rel target = $region3
    $region8: #{board_loss.2} parent=1 // loop_exit
      _

</llo_original>
